<compile_context>
chip_gen: v7x
topology: tpu7x:2x2x1
jax: 0.10.0
libtpu: 0.0.40
codegen_flags: <defaults>
</compile_context>

<pallas_src>
import functools

import jax
import jax.numpy as jnp
from jax.experimental import pallas as pl
from jax.experimental.pallas import tpu as pltpu


_LN_EPS = 1e-6                     # timm ViT-S/16 LayerNorm eps
_MXU_DTYPE = jnp.bfloat16          # matmul-input dtype (accumulation is f32)
_VMEM_LIMIT = 32 * 1024 * 1024     # safe scoped-VMEM request on v5e/v6e/v7x
_VMEM = pl.BlockSpec(memory_space=pltpu.MemorySpace.VMEM)


# ------------------------------ in-kernel math ------------------------------

def _mm(a, b):
    """MXU matmul: bf16 inputs, f32 accumulate."""
    return jnp.dot(a.astype(_MXU_DTYPE), b.astype(_MXU_DTYPE),
                   preferred_element_type=jnp.float32)


def _mm_tb(a, b):
    """a @ b.T contracted on the MXU without materializing a transpose."""
    return jax.lax.dot_general(a.astype(_MXU_DTYPE), b.astype(_MXU_DTYPE),
                               (((1,), (1,)), ((), ())),
                               preferred_element_type=jnp.float32)


def _ln(x, g, b, eps):
    mu = jnp.mean(x, axis=-1, keepdims=True)
    var = jnp.mean(jnp.square(x - mu), axis=-1, keepdims=True)
    return (x - mu) * jax.lax.rsqrt(var + eps) * g + b


def _erf(x):
    # Abramowitz & Stegun 7.1.26 rational approximation, |err| < 1.5e-7:
    # keeps exact-GELU semantics to ~f32 accuracy using only VPU/EUP ops.
    p = 0.3275911
    a1, a2, a3, a4, a5 = (0.254829592, -0.284496736, 1.421413741,
                          -1.453152027, 1.061405429)
    ax = jnp.abs(x)
    t = 1.0 / (1.0 + p * ax)
    poly = ((((a5 * t + a4) * t + a3) * t + a2) * t + a1) * t
    y = 1.0 - poly * jnp.exp(-ax * ax)
    return jnp.where(x < 0.0, -y, y)


def _gelu_exact(x):
    return 0.5 * x * (1.0 + _erf(x * 0.7071067811865476))


# ----------------------------- Pallas kernels ------------------------------

def _block_kernel(x_ref, ln1_g, ln1_b, q_w, q_b, k_w, k_b, v_w, v_b,
                  attn_w, attn_b, ln2_g, ln2_b, fc1_w, fc1_b, fc2_w, fc2_b,
                  o_ref, *, num_heads, scale):
    """One fused pre-LN transformer block; activations never leave VMEM."""
    x = x_ref[...]                                    # (N, D) f32
    n, d = x.shape

    # --- attention branch:  x + proj(MHSA(LN1(x))) ---
    y = _ln(x, ln1_g[...], ln1_b[...], _LN_EPS)
    acc = jnp.zeros((n, d), jnp.float32)
    for h in range(num_heads):                        # static unroll over heads
        q = _mm(y, q_w[h]) + q_b[h]                   # (N, Dh)
        k = _mm(y, k_w[h]) + k_b[h]
        v = _mm(y, v_w[h]) + v_b[h]
        s = _mm_tb(q, k) * scale                      # (N, N)
        s = s - jnp.max(s, axis=-1, keepdims=True)
        pr = jnp.exp(s)
        pr = pr * pl.reciprocal(jnp.sum(pr, axis=-1, keepdims=True), approx=True)
        o_h = _mm(pr, v)                              # (N, Dh)
        acc = acc + _mm(o_h, attn_w[h])               # per-head out-proj, f32 acc
    x = x + acc + attn_b[...]

    # --- MLP branch:  x + fc2(gelu(fc1(LN2(x)))); hidden stays in VMEM ---
    y = _ln(x, ln2_g[...], ln2_b[...], _LN_EPS)
    y = _mm(y, fc1_w[...]) + fc1_b[...]
    y = _gelu_exact(y)
    y = _mm(y, fc2_w[...]) + fc2_b[...]
    o_ref[...] = x + y


def _embed_kernel(p_ref, w_ref, add_ref, o_ref):
    # tokens = [cls ; patches @ W + b] + pos, with cls/pos/bias folded into the
    # additive table `add` at init (row 0 of the padded patch matrix is zero).
    o_ref[...] = _mm(p_ref[...], w_ref[...]) + add_ref[...]


def _head_kernel(f_ref, g_ref, b_ref, w_ref, pb_ref, o_ref):
    y = _ln(f_ref[...], g_ref[...], b_ref[...], _LN_EPS)   # backbone.forward_norm
    o_ref[...] = _mm(y, w_ref[...]) + pb_ref[...]          # projector Linear


# ------------------------------- call wrappers ------------------------------

def _resident(arr):
    """Full-array block, constant block index -> stays resident across grid."""
    if arr.ndim == 2:
        return pl.BlockSpec(arr.shape, lambda i: (0, 0))
    return pl.BlockSpec(arr.shape, lambda i: (0, 0, 0))


def block_forward(tok, p):
    b, n, d = tok.shape
    h = p["num_heads"]
    hidden = p["fc1_w"].shape[1]
    weights = (p["ln1_g"], p["ln1_b"], p["q_w"], p["q_b"], p["k_w"], p["k_b"],
               p["v_w"], p["v_b"], p["attn_w"], p["attn_b"], p["ln2_g"],
               p["ln2_b"], p["fc1_w"], p["fc1_b"], p["fc2_w"], p["fc2_b"])
    flops = int(b * (8 * n * d * d + 4 * n * n * d + 4 * n * d * hidden))
    trans = int(b * n * (h * n + hidden + 2))
    bytes_acc = int(4 * (2 * b * n * d + sum(int(w.size) for w in weights)))
    return pl.pallas_call(
        functools.partial(_block_kernel, num_heads=h,
                          scale=float((d // h) ** -0.5)),
        out_shape=jax.ShapeDtypeStruct((b, n, d), jnp.float32),
        grid=(b,),
        in_specs=[pl.BlockSpec((None, n, d), lambda i: (i, 0, 0))]
                 + [_resident(w) for w in weights],
        out_specs=pl.BlockSpec((None, n, d), lambda i: (i, 0, 0)),
        compiler_params=pltpu.CompilerParams(
            dimension_semantics=("parallel",), vmem_limit_bytes=_VMEM_LIMIT),
        cost_estimate=pl.CostEstimate(flops=flops, transcendentals=trans,
                                      bytes_accessed=bytes_acc),
    )(tok, *weights)


def patch_embed(patches_pad, params):
    b, n, k = patches_pad.shape
    d = params["patch_w"].shape[1]
    return pl.pallas_call(
        _embed_kernel,
        out_shape=jax.ShapeDtypeStruct((b, n, d), jnp.float32),
        grid=(b,),
        in_specs=[pl.BlockSpec((None, n, k), lambda i: (i, 0, 0)),
                  _resident(params["patch_w"]),
                  _resident(params["embed_add"])],
        out_specs=pl.BlockSpec((None, n, d), lambda i: (i, 0, 0)),
        compiler_params=pltpu.CompilerParams(
            dimension_semantics=("parallel",), vmem_limit_bytes=_VMEM_LIMIT),
    )(patches_pad, params["patch_w"], params["embed_add"])


def head_forward(feat, params):
    b, _ = feat.shape
    e = params["proj_w"].shape[1]
    return pl.pallas_call(
        _head_kernel,
        out_shape=jax.ShapeDtypeStruct((b, e), jnp.float32),
        in_specs=[_VMEM] * 5,
        out_specs=_VMEM,
    )(feat, params["norm_g"], params["norm_b"],
      params["proj_w"], params["proj_b"])


# --------------------------- model forward (glue) ---------------------------

def encoder_forward(x, params):
    """Equivalent of Encoder.forward: returns (projector(norm(feat)), feat)."""
    b, c, hh, ww = x.shape
    ps = params["patch_size"]
    nh, nw = hh // ps, ww // ps
    # PatchEmbed Conv2d(C, D, kernel=P, stride=P) == matmul over flattened
    # (c, kh, kw) patches.  The patch gather runs once in XLA on the raw image.
    # TODO(synk): at real image sizes this gather belongs in the embed kernel's
    # BlockSpec index_map / in-kernel DMA instead of an XLA 6-D transpose.
    patches = (x.reshape(b, c, nh, ps, nw, ps)
                 .transpose(0, 2, 4, 1, 3, 5)
                 .reshape(b, nh * nw, c * ps * ps))
    patches = jnp.pad(patches, ((0, 0), (1, 0), (0, 0)))   # row 0 <-> cls slot
    tok = patch_embed(patches, params)                     # (B, 1+Np, D)
    for blk in params["blocks"]:
        tok = block_forward(tok, blk)
    feat = tok[:, 0]                                       # cls token, pre-norm
    emb = head_forward(feat, params)                       # fused LN + projector
    return emb, feat


# ------------------------- deterministic parameters -------------------------

def _stack_heads(qkv_w, qkv_b, proj_w, num_heads):
    """Fold the timm qkv/proj layout into per-head stacks (done once, offline)."""
    d = qkv_w.shape[0]
    dh = d // num_heads
    w = qkv_w.reshape(d, 3, num_heads, dh)            # timm reshape(.., 3, H, Dh)
    bias = qkv_b.reshape(3, num_heads, 1, dh)
    q_w = jnp.transpose(w[:, 0], (1, 0, 2))           # (H, D, Dh)
    k_w = jnp.transpose(w[:, 1], (1, 0, 2))
    v_w = jnp.transpose(w[:, 2], (1, 0, 2))
    attn_w = proj_w.reshape(num_heads, dh, d)          # (H, Dh, D)
    return q_w, k_w, v_w, bias[0], bias[1], bias[2], attn_w


def init_params(key, *, in_chans=3, img_size=32, patch_size=16, embed_dim=32,
                depth=2, num_heads=2, mlp_ratio=4, emb_dim=16):
    # TODO(synk): the real module loads a pretrained ViT-S/16 checkpoint from
    # disk; weights here are synthetic (trunc-normal, zero bias, unit LN gain).
    n_patches = (img_size // patch_size) ** 2
    ks = jax.random.split(key, 4 + depth)

    def trunc(k, shape, std=0.02):
        return (std * jax.random.truncated_normal(k, -2.0, 2.0, shape)).astype(jnp.float32)

    cls_token = trunc(ks[1], (1, embed_dim))
    pos_embed = trunc(ks[2], (n_patches + 1, embed_dim))
    patch_b = jnp.zeros((1, embed_dim), jnp.float32)
    # cls token + pos-embed + patch bias folded into one additive (N, D) table.
    embed_add = jnp.concatenate([cls_token + pos_embed[:1],
                                 patch_b + pos_embed[1:]], axis=0)

    params = dict(
        patch_size=patch_size,
        embed_dim=embed_dim,
        patch_w=trunc(ks[0], (in_chans * patch_size * patch_size, embed_dim)),
        embed_add=embed_add,
        norm_g=jnp.ones((1, embed_dim), jnp.float32),
        norm_b=jnp.zeros((1, embed_dim), jnp.float32),
        proj_w=trunc(ks[3], (embed_dim, emb_dim)),
        proj_b=jnp.zeros((1, emb_dim), jnp.float32),
        blocks=[],
    )
    hidden = embed_dim * mlp_ratio
    for i in range(depth):
        bk = jax.random.split(ks[4 + i], 4)
        qkv_w = trunc(bk[0], (embed_dim, 3 * embed_dim))
        qkv_b = jnp.zeros((3 * embed_dim,), jnp.float32)
        attn_proj_w = trunc(bk[1], (embed_dim, embed_dim))
        q_w, k_w, v_w, q_b, k_b, v_b, attn_w = _stack_heads(
            qkv_w, qkv_b, attn_proj_w, num_heads)
        params["blocks"].append(dict(
            num_heads=num_heads,
            ln1_g=jnp.ones((1, embed_dim), jnp.float32),
            ln1_b=jnp.zeros((1, embed_dim), jnp.float32),
            q_w=q_w, q_b=q_b, k_w=k_w, k_b=k_b, v_w=v_w, v_b=v_b,
            attn_w=attn_w,
            attn_b=jnp.zeros((1, embed_dim), jnp.float32),
            ln2_g=jnp.ones((1, embed_dim), jnp.float32),
            ln2_b=jnp.zeros((1, embed_dim), jnp.float32),
            fc1_w=trunc(bk[2], (embed_dim, hidden)),
            fc1_b=jnp.zeros((1, hidden), jnp.float32),
            fc2_w=trunc(bk[3], (hidden, embed_dim)),
            fc2_b=jnp.zeros((1, embed_dim), jnp.float32),
        ))
    return params


# ----------------------------------- main -----------------------------------

if __name__ == "__main__":
    key = jax.random.PRNGKey(0)
    params = init_params(key)

    x = jax.random.normal(jax.random.fold_in(key, 123), (2, 3, 32, 32),
                          dtype=jnp.float32)

    fwd = jax.jit(lambda img: encoder_forward(img, params))
    emb, feat = fwd(x)
    jax.block_until_ready((emb, feat))

    assert emb.shape == (2, 16) and feat.shape == (2, 32)
    assert emb.dtype == jnp.float32 and feat.dtype == jnp.float32
    print("KERNEL_OK")
</pallas_src>

<mosaic_0001>
module attributes {stable_mosaic.version = 11 : i64} {
  func.func @_head_kernel(%arg0: memref<2x32xf32, #tpu.memory_space<vmem>>, %arg1: memref<1x32xf32, #tpu.memory_space<vmem>>, %arg2: memref<1x32xf32, #tpu.memory_space<vmem>>, %arg3: memref<32x16xf32, #tpu.memory_space<vmem>>, %arg4: memref<1x16xf32, #tpu.memory_space<vmem>>, %arg5: memref<2x16xf32, #tpu.memory_space<vmem>>) attributes {dimension_semantics = [], scalar_prefetch = 0 : i64, scratch_operands = 0 : i64, tpu.core_type = #tpu.core_type<tc>} {
    %c0 = arith.constant 0 : index
    %c0_0 = arith.constant 0 : index
    %0 = vector.load %arg0[%c0, %c0_0] : memref<2x32xf32, #tpu.memory_space<vmem>>, vector<2x32xf32>
    %c0_1 = arith.constant 0 : index
    %c0_2 = arith.constant 0 : index
    %1 = vector.load %arg1[%c0_1, %c0_2] : memref<1x32xf32, #tpu.memory_space<vmem>>, vector<1x32xf32>
    %c0_3 = arith.constant 0 : index
    %c0_4 = arith.constant 0 : index
    %2 = vector.load %arg2[%c0_3, %c0_4] : memref<1x32xf32, #tpu.memory_space<vmem>>, vector<1x32xf32>
    %cst = arith.constant dense<0.000000e+00> : vector<2xf32>
    %3 = vector.multi_reduction <add>, %0, %cst [1] : vector<2x32xf32> to vector<2xf32>
    %4 = vector.shape_cast %3 : vector<2xf32> to vector<2x1xf32>
    %cst_5 = arith.constant 3.200000e+01 : f32
    %5 = vector.broadcast %cst_5 : f32 to vector<2x1xf32>
    %6 = arith.divf %4, %5 : vector<2x1xf32>
    %7 = vector.broadcast %6 : vector<2x1xf32> to vector<2x32xf32>
    %8 = arith.subf %0, %7 : vector<2x32xf32>
    %9 = arith.mulf %8, %8 : vector<2x32xf32>
    %cst_6 = arith.constant dense<0.000000e+00> : vector<2xf32>
    %10 = vector.multi_reduction <add>, %9, %cst_6 [1] : vector<2x32xf32> to vector<2xf32>
    %11 = vector.shape_cast %10 : vector<2xf32> to vector<2x1xf32>
    %cst_7 = arith.constant 3.200000e+01 : f32
    %12 = vector.broadcast %cst_7 : f32 to vector<2x1xf32>
    %13 = arith.divf %11, %12 : vector<2x1xf32>
    %14 = vector.broadcast %6 : vector<2x1xf32> to vector<2x32xf32>
    %15 = arith.subf %0, %14 : vector<2x32xf32>
    %cst_8 = arith.constant 9.99999997E-7 : f32
    %16 = vector.broadcast %cst_8 : f32 to vector<2x1xf32>
    %17 = arith.addf %13, %16 : vector<2x1xf32>
    %18 = math.rsqrt %17 : vector<2x1xf32>
    %19 = vector.broadcast %18 : vector<2x1xf32> to vector<2x32xf32>
    %20 = arith.mulf %15, %19 : vector<2x32xf32>
    %21 = vector.broadcast %1 : vector<1x32xf32> to vector<2x32xf32>
    %22 = arith.mulf %20, %21 : vector<2x32xf32>
    %23 = vector.broadcast %2 : vector<1x32xf32> to vector<2x32xf32>
    %24 = arith.addf %22, %23 : vector<2x32xf32>
    %c0_9 = arith.constant 0 : index
    %c0_10 = arith.constant 0 : index
    %25 = vector.load %arg3[%c0_9, %c0_10] : memref<32x16xf32, #tpu.memory_space<vmem>>, vector<32x16xf32>
    %26 = arith.truncf %24 : vector<2x32xf32> to vector<2x32xbf16>
    %27 = arith.truncf %25 : vector<32x16xf32> to vector<32x16xbf16>
    %cst_11 = arith.constant dense<0.000000e+00> : vector<2x16xf32>
    %28 = tpu.matmul %26, %27, %cst_11 {dimension_numbers = #tpu.dot_dimension_numbers<[1], [0], [0], [1], [0, 0, 1, 1], [], []>} : vector<2x32xbf16>, vector<32x16xbf16>, vector<2x16xf32> -> vector<2x16xf32>
    %c0_12 = arith.constant 0 : index
    %c0_13 = arith.constant 0 : index
    %29 = vector.load %arg4[%c0_12, %c0_13] : memref<1x16xf32, #tpu.memory_space<vmem>>, vector<1x16xf32>
    %30 = vector.broadcast %29 : vector<1x16xf32> to vector<2x16xf32>
    %31 = arith.addf %28, %30 : vector<2x16xf32>
    %c0_14 = arith.constant 0 : index
    %c0_15 = arith.constant 0 : index
    %32 = vector.load %arg5[%c0_14, %c0_15] : memref<2x16xf32, #tpu.memory_space<vmem>>, vector<2x16xf32>
    tpu.vector_store %arg5[%c0_14, %c0_15], %31 {strides = array<i32>} : memref<2x16xf32, #tpu.memory_space<vmem>>, vector<2x16xf32>,
    return
  }
}

module attributes {stable_mosaic.version = 11 : i64} {
  func.func @_embed_kernel(%arg0: i32, %arg1: memref<1x5x768xf32, #tpu.memory_space<vmem>>, %arg2: memref<768x32xf32, #tpu.memory_space<vmem>>, %arg3: memref<5x32xf32, #tpu.memory_space<vmem>>, %arg4: memref<1x5x32xf32, #tpu.memory_space<vmem>>) attributes {dimension_semantics = [#tpu.dimension_semantics<parallel>], iteration_bounds = array<i64: 2>, scalar_prefetch = 0 : i64, scratch_operands = 0 : i64, tpu.core_type = #tpu.core_type<tc>, window_params = [{transform_indices = @transform_0, window_bounds = array<i64: 1, 5, 768>}, {pipeline_mode = #tpu.pipeline_mode<synchronous>, transform_indices = @transform_1, window_bounds = array<i64: 768, 32>}, {pipeline_mode = #tpu.pipeline_mode<synchronous>, transform_indices = @transform_2, window_bounds = array<i64: 5, 32>}, {transform_indices = @transform_3, window_bounds = array<i64: 1, 5, 32>}]} {
    %c0 = arith.constant 0 : index
    %c0_0 = arith.constant 0 : index
    %c0_1 = arith.constant 0 : index
    %0 = vector.load %arg1[%c0, %c0_0, %c0_1] : memref<1x5x768xf32, #tpu.memory_space<vmem>>, vector<1x5x768xf32>
    %1 = vector.shape_cast %0 : vector<1x5x768xf32> to vector<5x768xf32>
    %c0_2 = arith.constant 0 : index
    %c0_3 = arith.constant 0 : index
    %2 = vector.load %arg2[%c0_2, %c0_3] : memref<768x32xf32, #tpu.memory_space<vmem>>, vector<768x32xf32>
    %3 = arith.truncf %1 : vector<5x768xf32> to vector<5x768xbf16>
    %4 = arith.truncf %2 : vector<768x32xf32> to vector<768x32xbf16>
    %cst = arith.constant dense<0.000000e+00> : vector<5x32xf32>
    %5 = tpu.matmul %3, %4, %cst {dimension_numbers = #tpu.dot_dimension_numbers<[1], [0], [0], [1], [0, 0, 1, 1], [], []>} : vector<5x768xbf16>, vector<768x32xbf16>, vector<5x32xf32> -> vector<5x32xf32>
    %c0_4 = arith.constant 0 : index
    %c0_5 = arith.constant 0 : index
    %6 = vector.load %arg3[%c0_4, %c0_5] : memref<5x32xf32, #tpu.memory_space<vmem>>, vector<5x32xf32>
    %7 = arith.addf %5, %6 : vector<5x32xf32>
    %c0_6 = arith.constant 0 : index
    %c0_7 = arith.constant 0 : index
    %c0_8 = arith.constant 0 : index
    %8 = vector.load %arg4[%c0_6, %c0_7, %c0_8] : memref<1x5x32xf32, #tpu.memory_space<vmem>>, vector<1x5x32xf32>
    %9 = vector.shape_cast %8 : vector<1x5x32xf32> to vector<5x32xf32>
    %10 = vector.shape_cast %7 : vector<5x32xf32> to vector<1x5x32xf32>
    tpu.vector_store %arg4[%c0_6, %c0_7, %c0_8], %10 {strides = array<i32>} : memref<1x5x32xf32, #tpu.memory_space<vmem>>, vector<1x5x32xf32>,
    return
  }
  func.func @transform_0(%arg0: i32) -> (i32, i32, i32) {
    %c0_i32 = arith.constant 0 : i32
    %c0_i32_0 = arith.constant 0 : i32
    %c0_i32_1 = arith.constant 0 : i32
    return %arg0, %c0_i32, %c0_i32_0 : i32, i32, i32
  }
  func.func @transform_1(%arg0: i32) -> (i32, i32) {
    %c0_i32 = arith.constant 0 : i32
    %c0_i32_0 = arith.constant 0 : i32
    %c0_i32_1 = arith.constant 0 : i32
    return %c0_i32, %c0_i32_0 : i32, i32
  }
  func.func @transform_2(%arg0: i32) -> (i32, i32) {
    %c0_i32 = arith.constant 0 : i32
    %c0_i32_0 = arith.constant 0 : i32
    %c0_i32_1 = arith.constant 0 : i32
    return %c0_i32, %c0_i32_0 : i32, i32
  }
  func.func @transform_3(%arg0: i32) -> (i32, i32, i32) {
    %c0_i32 = arith.constant 0 : i32
    %c0_i32_0 = arith.constant 0 : i32
    %c0_i32_1 = arith.constant 0 : i32
    return %arg0, %c0_i32, %c0_i32_0 : i32, i32, i32
  }
}

module attributes {stable_mosaic.version = 11 : i64} {
  func.func @_block_kernel(%arg0: i32, %arg1: memref<1x5x32xf32, #tpu.memory_space<vmem>>, %arg2: memref<1x32xf32, #tpu.memory_space<vmem>>, %arg3: memref<1x32xf32, #tpu.memory_space<vmem>>, %arg4: memref<2x32x16xf32, #tpu.memory_space<vmem>>, %arg5: memref<2x1x16xf32, #tpu.memory_space<vmem>>, %arg6: memref<2x32x16xf32, #tpu.memory_space<vmem>>, %arg7: memref<2x1x16xf32, #tpu.memory_space<vmem>>, %arg8: memref<2x32x16xf32, #tpu.memory_space<vmem>>, %arg9: memref<2x1x16xf32, #tpu.memory_space<vmem>>, %arg10: memref<2x16x32xf32, #tpu.memory_space<vmem>>, %arg11: memref<1x32xf32, #tpu.memory_space<vmem>>, %arg12: memref<1x32xf32, #tpu.memory_space<vmem>>, %arg13: memref<1x32xf32, #tpu.memory_space<vmem>>, %arg14: memref<32x128xf32, #tpu.memory_space<vmem>>, %arg15: memref<1x128xf32, #tpu.memory_space<vmem>>, %arg16: memref<128x32xf32, #tpu.memory_space<vmem>>, %arg17: memref<1x32xf32, #tpu.memory_space<vmem>>, %arg18: memref<1x5x32xf32, #tpu.memory_space<vmem>>) attributes {dimension_semantics = [#tpu.dimension_semantics<parallel>], iteration_bounds = array<i64: 2>, scalar_prefetch = 0 : i64, scratch_operands = 0 : i64, tpu.core_type = #tpu.core_type<tc>, window_params = [{transform_indices = @transform_0, window_bounds = array<i64: 1, 5, 32>}, {pipeline_mode = #tpu.pipeline_mode<synchronous>, transform_indices = @transform_1, window_bounds = array<i64: 1, 32>}, {pipeline_mode = #tpu.pipeline_mode<synchronous>, transform_indices = @transform_2, window_bounds = array<i64: 1, 32>}, {pipeline_mode = #tpu.pipeline_mode<synchronous>, transform_indices = @transform_3, window_bounds = array<i64: 2, 32, 16>}, {pipeline_mode = #tpu.pipeline_mode<synchronous>, transform_indices = @transform_4, window_bounds = array<i64: 2, 1, 16>}, {pipeline_mode = #tpu.pipeline_mode<synchronous>, transform_indices = @transform_5, window_bounds = array<i64: 2, 32, 16>}, {pipeline_mode = #tpu.pipeline_mode<synchronous>, transform_indices = @transform_6, window_bounds = array<i64: 2, 1, 16>}, {pipeline_mode = #tpu.pipeline_mode<synchronous>, transform_indices = @transform_7, window_bounds = array<i64: 2, 32, 16>}, {pipeline_mode = #tpu.pipeline_mode<synchronous>, transform_indices = @transform_8, window_bounds = array<i64: 2, 1, 16>}, {pipeline_mode = #tpu.pipeline_mode<synchronous>, transform_indices = @transform_9, window_bounds = array<i64: 2, 16, 32>}, {pipeline_mode = #tpu.pipeline_mode<synchronous>, transform_indices = @transform_10, window_bounds = array<i64: 1, 32>}, {pipeline_mode = #tpu.pipeline_mode<synchronous>, transform_indices = @transform_11, window_bounds = array<i64: 1, 32>}, {pipeline_mode = #tpu.pipeline_mode<synchronous>, transform_indices = @transform_12, window_bounds = array<i64: 1, 32>}, {pipeline_mode = #tpu.pipeline_mode<synchronous>, transform_indices = @transform_13, window_bounds = array<i64: 32, 128>}, {pipeline_mode = #tpu.pipeline_mode<synchronous>, transform_indices = @transform_14, window_bounds = array<i64: 1, 128>}, {pipeline_mode = #tpu.pipeline_mode<synchronous>, transform_indices = @transform_15, window_bounds = array<i64: 128, 32>}, {pipeline_mode = #tpu.pipeline_mode<synchronous>, transform_indices = @transform_16, window_bounds = array<i64: 1, 32>}, {transform_indices = @transform_17, window_bounds = array<i64: 1, 5, 32>}]} {
    %c0 = arith.constant 0 : index
    %c0_0 = arith.constant 0 : index
    %c0_1 = arith.constant 0 : index
    %0 = vector.load %arg1[%c0, %c0_0, %c0_1] : memref<1x5x32xf32, #tpu.memory_space<vmem>>, vector<1x5x32xf32>
    %1 = vector.shape_cast %0 : vector<1x5x32xf32> to vector<5x32xf32>
    %c0_2 = arith.constant 0 : index
    %c0_3 = arith.constant 0 : index
    %2 = vector.load %arg2[%c0_2, %c0_3] : memref<1x32xf32, #tpu.memory_space<vmem>>, vector<1x32xf32>
    %c0_4 = arith.constant 0 : index
    %c0_5 = arith.constant 0 : index
    %3 = vector.load %arg3[%c0_4, %c0_5] : memref<1x32xf32, #tpu.memory_space<vmem>>, vector<1x32xf32>
    %cst = arith.constant dense<0.000000e+00> : vector<5xf32>
    %4 = vector.multi_reduction <add>, %1, %cst [1] : vector<5x32xf32> to vector<5xf32>
    %5 = vector.shape_cast %4 : vector<5xf32> to vector<5x1xf32>
    %cst_6 = arith.constant 3.200000e+01 : f32
    %6 = vector.broadcast %cst_6 : f32 to vector<5x1xf32>
    %7 = arith.divf %5, %6 : vector<5x1xf32>
    %8 = vector.broadcast %7 : vector<5x1xf32> to vector<5x32xf32>
    %9 = arith.subf %1, %8 : vector<5x32xf32>
    %10 = arith.mulf %9, %9 : vector<5x32xf32>
    %cst_7 = arith.constant dense<0.000000e+00> : vector<5xf32>
    %11 = vector.multi_reduction <add>, %10, %cst_7 [1] : vector<5x32xf32> to vector<5xf32>
    %12 = vector.shape_cast %11 : vector<5xf32> to vector<5x1xf32>
    %cst_8 = arith.constant 3.200000e+01 : f32
    %13 = vector.broadcast %cst_8 : f32 to vector<5x1xf32>
    %14 = arith.divf %12, %13 : vector<5x1xf32>
    %15 = vector.broadcast %7 : vector<5x1xf32> to vector<5x32xf32>
    %16 = arith.subf %1, %15 : vector<5x32xf32>
    %cst_9 = arith.constant 9.99999997E-7 : f32
    %17 = vector.broadcast %cst_9 : f32 to vector<5x1xf32>
    %18 = arith.addf %14, %17 : vector<5x1xf32>
    %19 = math.rsqrt %18 : vector<5x1xf32>
    %20 = vector.broadcast %19 : vector<5x1xf32> to vector<5x32xf32>
    %21 = arith.mulf %16, %20 : vector<5x32xf32>
    %22 = vector.broadcast %2 : vector<1x32xf32> to vector<5x32xf32>
    %23 = arith.mulf %21, %22 : vector<5x32xf32>
    %24 = vector.broadcast %3 : vector<1x32xf32> to vector<5x32xf32>
    %25 = arith.addf %23, %24 : vector<5x32xf32>
    %cst_10 = arith.constant 0.000000e+00 : f32
    %26 = vector.broadcast %cst_10 : f32 to vector<5x32xf32>
    %c0_11 = arith.constant 0 : index
    %c0_12 = arith.constant 0 : index
    %c0_13 = arith.constant 0 : index
    %27 = vector.load %arg4[%c0_11, %c0_12, %c0_13] : memref<2x32x16xf32, #tpu.memory_space<vmem>>, vector<1x32x16xf32>
    %28 = vector.shape_cast %27 : vector<1x32x16xf32> to vector<32x16xf32>
    %29 = arith.truncf %25 : vector<5x32xf32> to vector<5x32xbf16>
    %30 = arith.truncf %28 : vector<32x16xf32> to vector<32x16xbf16>
    %cst_14 = arith.constant dense<0.000000e+00> : vector<5x16xf32>
    %31 = tpu.matmul %29, %30, %cst_14 {dimension_numbers = #tpu.dot_dimension_numbers<[1], [0], [0], [1], [0, 0, 1, 1], [], []>} : vector<5x32xbf16>, vector<32x16xbf16>, vector<5x16xf32> -> vector<5x16xf32>
    %c0_15 = arith.constant 0 : index
    %c0_16 = arith.constant 0 : index
    %c0_17 = arith.constant 0 : index
    %32 = vector.load %arg5[%c0_15, %c0_16, %c0_17] : memref<2x1x16xf32, #tpu.memory_space<vmem>>, vector<1x1x16xf32>
    %33 = vector.shape_cast %32 : vector<1x1x16xf32> to vector<1x16xf32>
    %34 = vector.broadcast %33 : vector<1x16xf32> to vector<5x16xf32>
    %35 = arith.addf %31, %34 : vector<5x16xf32>
    %c0_18 = arith.constant 0 : index
    %c0_19 = arith.constant 0 : index
    %c0_20 = arith.constant 0 : index
    %36 = vector.load %arg6[%c0_18, %c0_19, %c0_20] : memref<2x32x16xf32, #tpu.memory_space<vmem>>, vector<1x32x16xf32>
    %37 = vector.shape_cast %36 : vector<1x32x16xf32> to vector<32x16xf32>
    %38 = arith.truncf %25 : vector<5x32xf32> to vector<5x32xbf16>
    %39 = arith.truncf %37 : vector<32x16xf32> to vector<32x16xbf16>
    %cst_21 = arith.constant dense<0.000000e+00> : vector<5x16xf32>
    %40 = tpu.matmul %38, %39, %cst_21 {dimension_numbers = #tpu.dot_dimension_numbers<[1], [0], [0], [1], [0, 0, 1, 1], [], []>} : vector<5x32xbf16>, vector<32x16xbf16>, vector<5x16xf32> -> vector<5x16xf32>
    %c0_22 = arith.constant 0 : index
    %c0_23 = arith.constant 0 : index
    %c0_24 = arith.constant 0 : index
    %41 = vector.load %arg7[%c0_22, %c0_23, %c0_24] : memref<2x1x16xf32, #tpu.memory_space<vmem>>, vector<1x1x16xf32>
    %42 = vector.shape_cast %41 : vector<1x1x16xf32> to vector<1x16xf32>
    %43 = vector.broadcast %42 : vector<1x16xf32> to vector<5x16xf32>
    %44 = arith.addf %40, %43 : vector<5x16xf32>
    %c0_25 = arith.constant 0 : index
    %c0_26 = arith.constant 0 : index
    %c0_27 = arith.constant 0 : index
    %45 = vector.load %arg8[%c0_25, %c0_26, %c0_27] : memref<2x32x16xf32, #tpu.memory_space<vmem>>, vector<1x32x16xf32>
    %46 = vector.shape_cast %45 : vector<1x32x16xf32> to vector<32x16xf32>
    %47 = arith.truncf %25 : vector<5x32xf32> to vector<5x32xbf16>
    %48 = arith.truncf %46 : vector<32x16xf32> to vector<32x16xbf16>
    %cst_28 = arith.constant dense<0.000000e+00> : vector<5x16xf32>
    %49 = tpu.matmul %47, %48, %cst_28 {dimension_numbers = #tpu.dot_dimension_numbers<[1], [0], [0], [1], [0, 0, 1, 1], [], []>} : vector<5x32xbf16>, vector<32x16xbf16>, vector<5x16xf32> -> vector<5x16xf32>
    %c0_29 = arith.constant 0 : index
    %c0_30 = arith.constant 0 : index
    %c0_31 = arith.constant 0 : index
    %50 = vector.load %arg9[%c0_29, %c0_30, %c0_31] : memref<2x1x16xf32, #tpu.memory_space<vmem>>, vector<1x1x16xf32>
    %51 = vector.shape_cast %50 : vector<1x1x16xf32> to vector<1x16xf32>
    %52 = vector.broadcast %51 : vector<1x16xf32> to vector<5x16xf32>
    %53 = arith.addf %49, %52 : vector<5x16xf32>
    %54 = arith.truncf %35 : vector<5x16xf32> to vector<5x16xbf16>
    %55 = arith.truncf %44 : vector<5x16xf32> to vector<5x16xbf16>
    %cst_32 = arith.constant dense<0.000000e+00> : vector<5x5xf32>
    %56 = tpu.matmul %54, %55, %cst_32 {dimension_numbers = #tpu.dot_dimension_numbers<[1], [1], [0], [0], [0, 0, 1, 0], [], []>} : vector<5x16xbf16>, vector<5x16xbf16>, vector<5x5xf32> -> vector<5x5xf32>
    %cst_33 = arith.constant 2.500000e-01 : f32
    %57 = vector.broadcast %cst_33 : f32 to vector<5x5xf32>
    %58 = arith.mulf %56, %57 : vector<5x5xf32>
    %cst_34 = arith.constant dense<0xFF800000> : vector<5xf32>
    %59 = vector.multi_reduction <maximumf>, %58, %cst_34 [1] : vector<5x5xf32> to vector<5xf32>
    %60 = vector.shape_cast %59 : vector<5xf32> to vector<5x1xf32>
    %61 = vector.broadcast %60 : vector<5x1xf32> to vector<5x5xf32>
    %62 = arith.subf %58, %61 : vector<5x5xf32>
    %63 = math.exp %62 : vector<5x5xf32>
    %cst_35 = arith.constant dense<0.000000e+00> : vector<5xf32>
    %64 = vector.multi_reduction <add>, %63, %cst_35 [1] : vector<5x5xf32> to vector<5xf32>
    %65 = vector.shape_cast %64 : vector<5xf32> to vector<5x1xf32>
    %66 = tpu.reciprocal %65 {approx = true} : vector<5x1xf32> -> vector<5x1xf32>
    %67 = vector.broadcast %66 : vector<5x1xf32> to vector<5x5xf32>
    %68 = arith.mulf %63, %67 : vector<5x5xf32>
    %69 = arith.truncf %68 : vector<5x5xf32> to vector<5x5xbf16>
    %70 = arith.truncf %53 : vector<5x16xf32> to vector<5x16xbf16>
    %cst_36 = arith.constant dense<0.000000e+00> : vector<5x16xf32>
    %71 = tpu.matmul %69, %70, %cst_36 {dimension_numbers = #tpu.dot_dimension_numbers<[1], [0], [0], [1], [0, 0, 1, 1], [], []>} : vector<5x5xbf16>, vector<5x16xbf16>, vector<5x16xf32> -> vector<5x16xf32>
    %c0_37 = arith.constant 0 : index
    %c0_38 = arith.constant 0 : index
    %c0_39 = arith.constant 0 : index
    %72 = vector.load %arg10[%c0_37, %c0_38, %c0_39] : memref<2x16x32xf32, #tpu.memory_space<vmem>>, vector<1x16x32xf32>
    %73 = vector.shape_cast %72 : vector<1x16x32xf32> to vector<16x32xf32>
    %74 = arith.truncf %71 : vector<5x16xf32> to vector<5x16xbf16>
    %75 = arith.truncf %73 : vector<16x32xf32> to vector<16x32xbf16>
    %cst_40 = arith.constant dense<0.000000e+00> : vector<5x32xf32>
    %76 = tpu.matmul %74, %75, %cst_40 {dimension_numbers = #tpu.dot_dimension_numbers<[1], [0], [0], [1], [0, 0, 1, 1], [], []>} : vector<5x16xbf16>, vector<16x32xbf16>, vector<5x32xf32> -> vector<5x32xf32>
    %77 = arith.addf %26, %76 : vector<5x32xf32>
    %c1 = arith.constant 1 : index
    %c0_41 = arith.constant 0 : index
    %c0_42 = arith.constant 0 : index
    %78 = vector.load %arg4[%c1, %c0_41, %c0_42] : memref<2x32x16xf32, #tpu.memory_space<vmem>>, vector<1x32x16xf32>
    %79 = vector.shape_cast %78 : vector<1x32x16xf32> to vector<32x16xf32>
    %80 = arith.truncf %25 : vector<5x32xf32> to vector<5x32xbf16>
    %81 = arith.truncf %79 : vector<32x16xf32> to vector<32x16xbf16>
    %cst_43 = arith.constant dense<0.000000e+00> : vector<5x16xf32>
    %82 = tpu.matmul %80, %81, %cst_43 {dimension_numbers = #tpu.dot_dimension_numbers<[1], [0], [0], [1], [0, 0, 1, 1], [], []>} : vector<5x32xbf16>, vector<32x16xbf16>, vector<5x16xf32> -> vector<5x16xf32>
    %c1_44 = arith.constant 1 : index
    %c0_45 = arith.constant 0 : index
    %c0_46 = arith.constant 0 : index
    %83 = vector.load %arg5[%c1_44, %c0_45, %c0_46] : memref<2x1x16xf32, #tpu.memory_space<vmem>>, vector<1x1x16xf32>
    %84 = vector.shape_cast %83 : vector<1x1x16xf32> to vector<1x16xf32>
    %85 = vector.broadcast %84 : vector<1x16xf32> to vector<5x16xf32>
    %86 = arith.addf %82, %85 : vector<5x16xf32>
    %c1_47 = arith.constant 1 : index
    %c0_48 = arith.constant 0 : index
    %c0_49 = arith.constant 0 : index
    %87 = vector.load %arg6[%c1_47, %c0_48, %c0_49] : memref<2x32x16xf32, #tpu.memory_space<vmem>>, vector<1x32x16xf32>
    %88 = vector.shape_cast %87 : vector<1x32x16xf32> to vector<32x16xf32>
    %89 = arith.truncf %25 : vector<5x32xf32> to vector<5x32xbf16>
    %90 = arith.truncf %88 : vector<32x16xf32> to vector<32x16xbf16>
    %cst_50 = arith.constant dense<0.000000e+00> : vector<5x16xf32>
    %91 = tpu.matmul %89, %90, %cst_50 {dimension_numbers = #tpu.dot_dimension_numbers<[1], [0], [0], [1], [0, 0, 1, 1], [], []>} : vector<5x32xbf16>, vector<32x16xbf16>, vector<5x16xf32> -> vector<5x16xf32>
    %c1_51 = arith.constant 1 : index
    %c0_52 = arith.constant 0 : index
    %c0_53 = arith.constant 0 : index
    %92 = vector.load %arg7[%c1_51, %c0_52, %c0_53] : memref<2x1x16xf32, #tpu.memory_space<vmem>>, vector<1x1x16xf32>
    %93 = vector.shape_cast %92 : vector<1x1x16xf32> to vector<1x16xf32>
    %94 = vector.broadcast %93 : vector<1x16xf32> to vector<5x16xf32>
    %95 = arith.addf %91, %94 : vector<5x16xf32>
    %c1_54 = arith.constant 1 : index
    %c0_55 = arith.constant 0 : index
    %c0_56 = arith.constant 0 : index
    %96 = vector.load %arg8[%c1_54, %c0_55, %c0_56] : memref<2x32x16xf32, #tpu.memory_space<vmem>>, vector<1x32x16xf32>
    %97 = vector.shape_cast %96 : vector<1x32x16xf32> to vector<32x16xf32>
    %98 = arith.truncf %25 : vector<5x32xf32> to vector<5x32xbf16>
    %99 = arith.truncf %97 : vector<32x16xf32> to vector<32x16xbf16>
    %cst_57 = arith.constant dense<0.000000e+00> : vector<5x16xf32>
    %100 = tpu.matmul %98, %99, %cst_57 {dimension_numbers = #tpu.dot_dimension_numbers<[1], [0], [0], [1], [0, 0, 1, 1], [], []>} : vector<5x32xbf16>, vector<32x16xbf16>, vector<5x16xf32> -> vector<5x16xf32>
    %c1_58 = arith.constant 1 : index
    %c0_59 = arith.constant 0 : index
    %c0_60 = arith.constant 0 : index
    %101 = vector.load %arg9[%c1_58, %c0_59, %c0_60] : memref<2x1x16xf32, #tpu.memory_space<vmem>>, vector<1x1x16xf32>
    %102 = vector.shape_cast %101 : vector<1x1x16xf32> to vector<1x16xf32>
    %103 = vector.broadcast %102 : vector<1x16xf32> to vector<5x16xf32>
    %104 = arith.addf %100, %103 : vector<5x16xf32>
    %105 = arith.truncf %86 : vector<5x16xf32> to vector<5x16xbf16>
    %106 = arith.truncf %95 : vector<5x16xf32> to vector<5x16xbf16>
    %cst_61 = arith.constant dense<0.000000e+00> : vector<5x5xf32>
    %107 = tpu.matmul %105, %106, %cst_61 {dimension_numbers = #tpu.dot_dimension_numbers<[1], [1], [0], [0], [0, 0, 1, 0], [], []>} : vector<5x16xbf16>, vector<5x16xbf16>, vector<5x5xf32> -> vector<5x5xf32>
    %cst_62 = arith.constant 2.500000e-01 : f32
    %108 = vector.broadcast %cst_62 : f32 to vector<5x5xf32>
    %109 = arith.mulf %107, %108 : vector<5x5xf32>
    %cst_63 = arith.constant dense<0xFF800000> : vector<5xf32>
    %110 = vector.multi_reduction <maximumf>, %109, %cst_63 [1] : vector<5x5xf32> to vector<5xf32>
    %111 = vector.shape_cast %110 : vector<5xf32> to vector<5x1xf32>
    %112 = vector.broadcast %111 : vector<5x1xf32> to vector<5x5xf32>
    %113 = arith.subf %109, %112 : vector<5x5xf32>
    %114 = math.exp %113 : vector<5x5xf32>
    %cst_64 = arith.constant dense<0.000000e+00> : vector<5xf32>
    %115 = vector.multi_reduction <add>, %114, %cst_64 [1] : vector<5x5xf32> to vector<5xf32>
    %116 = vector.shape_cast %115 : vector<5xf32> to vector<5x1xf32>
    %117 = tpu.reciprocal %116 {approx = true} : vector<5x1xf32> -> vector<5x1xf32>
    %118 = vector.broadcast %117 : vector<5x1xf32> to vector<5x5xf32>
    %119 = arith.mulf %114, %118 : vector<5x5xf32>
    %120 = arith.truncf %119 : vector<5x5xf32> to vector<5x5xbf16>
    %121 = arith.truncf %104 : vector<5x16xf32> to vector<5x16xbf16>
    %cst_65 = arith.constant dense<0.000000e+00> : vector<5x16xf32>
    %122 = tpu.matmul %120, %121, %cst_65 {dimension_numbers = #tpu.dot_dimension_numbers<[1], [0], [0], [1], [0, 0, 1, 1], [], []>} : vector<5x5xbf16>, vector<5x16xbf16>, vector<5x16xf32> -> vector<5x16xf32>
    %c1_66 = arith.constant 1 : index
    %c0_67 = arith.constant 0 : index
    %c0_68 = arith.constant 0 : index
    %123 = vector.load %arg10[%c1_66, %c0_67, %c0_68] : memref<2x16x32xf32, #tpu.memory_space<vmem>>, vector<1x16x32xf32>
    %124 = vector.shape_cast %123 : vector<1x16x32xf32> to vector<16x32xf32>
    %125 = arith.truncf %122 : vector<5x16xf32> to vector<5x16xbf16>
    %126 = arith.truncf %124 : vector<16x32xf32> to vector<16x32xbf16>
    %cst_69 = arith.constant dense<0.000000e+00> : vector<5x32xf32>
    %127 = tpu.matmul %125, %126, %cst_69 {dimension_numbers = #tpu.dot_dimension_numbers<[1], [0], [0], [1], [0, 0, 1, 1], [], []>} : vector<5x16xbf16>, vector<16x32xbf16>, vector<5x32xf32> -> vector<5x32xf32>
    %128 = arith.addf %77, %127 : vector<5x32xf32>
    %129 = arith.addf %1, %128 : vector<5x32xf32>
    %c0_70 = arith.constant 0 : index
    %c0_71 = arith.constant 0 : index
    %130 = vector.load %arg11[%c0_70, %c0_71] : memref<1x32xf32, #tpu.memory_space<vmem>>, vector<1x32xf32>
    %131 = vector.broadcast %130 : vector<1x32xf32> to vector<5x32xf32>
    %132 = arith.addf %129, %131 : vector<5x32xf32>
    %c0_72 = arith.constant 0 : index
    %c0_73 = arith.constant 0 : index
    %133 = vector.load %arg12[%c0_72, %c0_73] : memref<1x32xf32, #tpu.memory_space<vmem>>, vector<1x32xf32>
    %c0_74 = arith.constant 0 : index
    %c0_75 = arith.constant 0 : index
    %134 = vector.load %arg13[%c0_74, %c0_75] : memref<1x32xf32, #tpu.memory_space<vmem>>, vector<1x32xf32>
    %cst_76 = arith.constant dense<0.000000e+00> : vector<5xf32>
    %135 = vector.multi_reduction <add>, %132, %cst_76 [1] : vector<5x32xf32> to vector<5xf32>
    %136 = vector.shape_cast %135 : vector<5xf32> to vector<5x1xf32>
    %cst_77 = arith.constant 3.200000e+01 : f32
    %137 = vector.broadcast %cst_77 : f32 to vector<5x1xf32>
    %138 = arith.divf %136, %137 : vector<5x1xf32>
    %139 = vector.broadcast %138 : vector<5x1xf32> to vector<5x32xf32>
    %140 = arith.subf %132, %139 : vector<5x32xf32>
    %141 = arith.mulf %140, %140 : vector<5x32xf32>
    %cst_78 = arith.constant dense<0.000000e+00> : vector<5xf32>
    %142 = vector.multi_reduction <add>, %141, %cst_78 [1] : vector<5x32xf32> to vector<5xf32>
    %143 = vector.shape_cast %142 : vector<5xf32> to vector<5x1xf32>
    %cst_79 = arith.constant 3.200000e+01 : f32
    %144 = vector.broadcast %cst_79 : f32 to vector<5x1xf32>
    %145 = arith.divf %143, %144 : vector<5x1xf32>
    %146 = vector.broadcast %138 : vector<5x1xf32> to vector<5x32xf32>
    %147 = arith.subf %132, %146 : vector<5x32xf32>
    %cst_80 = arith.constant 9.99999997E-7 : f32
    %148 = vector.broadcast %cst_80 : f32 to vector<5x1xf32>
    %149 = arith.addf %145, %148 : vector<5x1xf32>
    %150 = math.rsqrt %149 : vector<5x1xf32>
    %151 = vector.broadcast %150 : vector<5x1xf32> to vector<5x32xf32>
    %152 = arith.mulf %147, %151 : vector<5x32xf32>
    %153 = vector.broadcast %133 : vector<1x32xf32> to vector<5x32xf32>
    %154 = arith.mulf %152, %153 : vector<5x32xf32>
    %155 = vector.broadcast %134 : vector<1x32xf32> to vector<5x32xf32>
    %156 = arith.addf %154, %155 : vector<5x32xf32>
    %c0_81 = arith.constant 0 : index
    %c0_82 = arith.constant 0 : index
    %157 = vector.load %arg14[%c0_81, %c0_82] : memref<32x128xf32, #tpu.memory_space<vmem>>, vector<32x128xf32>
    %158 = arith.truncf %156 : vector<5x32xf32> to vector<5x32xbf16>
    %159 = arith.truncf %157 : vector<32x128xf32> to vector<32x128xbf16>
    %cst_83 = arith.constant dense<0.000000e+00> : vector<5x128xf32>
    %160 = tpu.matmul %158, %159, %cst_83 {dimension_numbers = #tpu.dot_dimension_numbers<[1], [0], [0], [1], [0, 0, 1, 1], [], []>} : vector<5x32xbf16>, vector<32x128xbf16>, vector<5x128xf32> -> vector<5x128xf32>
    %c0_84 = arith.constant 0 : index
    %c0_85 = arith.constant 0 : index
    %161 = vector.load %arg15[%c0_84, %c0_85] : memref<1x128xf32, #tpu.memory_space<vmem>>, vector<1x128xf32>
    %162 = vector.broadcast %161 : vector<1x128xf32> to vector<5x128xf32>
    %163 = arith.addf %160, %162 : vector<5x128xf32>
    %cst_86 = arith.constant 5.000000e-01 : f32
    %164 = vector.broadcast %cst_86 : f32 to vector<5x128xf32>
    %165 = arith.mulf %164, %163 : vector<5x128xf32>
    %cst_87 = arith.constant 0.707106769 : f32
    %166 = vector.broadcast %cst_87 : f32 to vector<5x128xf32>
    %167 = arith.mulf %163, %166 : vector<5x128xf32>
    %168 = math.absf %167 : vector<5x128xf32>
    %cst_88 = arith.constant 0.327591091 : f32
    %169 = vector.broadcast %cst_88 : f32 to vector<5x128xf32>
    %170 = arith.mulf %169, %168 : vector<5x128xf32>
    %cst_89 = arith.constant 1.000000e+00 : f32
    %171 = vector.broadcast %cst_89 : f32 to vector<5x128xf32>
    %172 = arith.addf %171, %170 : vector<5x128xf32>
    %cst_90 = arith.constant 1.000000e+00 : f32
    %173 = vector.broadcast %cst_90 : f32 to vector<5x128xf32>
    %174 = arith.divf %173, %172 : vector<5x128xf32>
    %cst_91 = arith.constant 1.06140542 : f32
    %175 = vector.broadcast %cst_91 : f32 to vector<5x128xf32>
    %176 = arith.mulf %175, %174 : vector<5x128xf32>
    %cst_92 = arith.constant -1.45315206 : f32
    %177 = vector.broadcast %cst_92 : f32 to vector<5x128xf32>
    %178 = arith.addf %176, %177 : vector<5x128xf32>
    %179 = arith.mulf %178, %174 : vector<5x128xf32>
    %cst_93 = arith.constant 1.42141378 : f32
    %180 = vector.broadcast %cst_93 : f32 to vector<5x128xf32>
    %181 = arith.addf %179, %180 : vector<5x128xf32>
    %182 = arith.mulf %181, %174 : vector<5x128xf32>
    %cst_94 = arith.constant -0.284496725 : f32
    %183 = vector.broadcast %cst_94 : f32 to vector<5x128xf32>
    %184 = arith.addf %182, %183 : vector<5x128xf32>
    %185 = arith.mulf %184, %174 : vector<5x128xf32>
    %cst_95 = arith.constant 0.254829586 : f32
    %186 = vector.broadcast %cst_95 : f32 to vector<5x128xf32>
    %187 = arith.addf %185, %186 : vector<5x128xf32>
    %188 = arith.mulf %187, %174 : vector<5x128xf32>
    %cst_96 = arith.constant 0.000000e+00 : f32
    %189 = vector.broadcast %cst_96 : f32 to vector<5x128xf32>
    %190 = arith.subf %189, %168 : vector<5x128xf32>
    %191 = arith.mulf %190, %168 : vector<5x128xf32>
    %192 = math.exp %191 : vector<5x128xf32>
    %193 = arith.mulf %188, %192 : vector<5x128xf32>
    %cst_97 = arith.constant 1.000000e+00 : f32
    %194 = vector.broadcast %cst_97 : f32 to vector<5x128xf32>
    %195 = arith.subf %194, %193 : vector<5x128xf32>
    %cst_98 = arith.constant 0.000000e+00 : f32
    %196 = vector.broadcast %cst_98 : f32 to vector<5x128xf32>
    %197 = arith.cmpf olt, %167, %196 : vector<5x128xf32>
    %cst_99 = arith.constant 0.000000e+00 : f32
    %198 = vector.broadcast %cst_99 : f32 to vector<5x128xf32>
    %199 = arith.subf %198, %195 : vector<5x128xf32>
    %200 = arith.select %197, %199, %195 : vector<5x128xi1>, vector<5x128xf32>
    %cst_100 = arith.constant 1.000000e+00 : f32
    %201 = vector.broadcast %cst_100 : f32 to vector<5x128xf32>
    %202 = arith.addf %201, %200 : vector<5x128xf32>
    %203 = arith.mulf %165, %202 : vector<5x128xf32>
    %c0_101 = arith.constant 0 : index
    %c0_102 = arith.constant 0 : index
    %204 = vector.load %arg16[%c0_101, %c0_102] : memref<128x32xf32, #tpu.memory_space<vmem>>, vector<128x32xf32>
    %205 = arith.truncf %203 : vector<5x128xf32> to vector<5x128xbf16>
    %206 = arith.truncf %204 : vector<128x32xf32> to vector<128x32xbf16>
    %cst_103 = arith.constant dense<0.000000e+00> : vector<5x32xf32>
    %207 = tpu.matmul %205, %206, %cst_103 {dimension_numbers = #tpu.dot_dimension_numbers<[1], [0], [0], [1], [0, 0, 1, 1], [], []>} : vector<5x128xbf16>, vector<128x32xbf16>, vector<5x32xf32> -> vector<5x32xf32>
    %c0_104 = arith.constant 0 : index
    %c0_105 = arith.constant 0 : index
    %208 = vector.load %arg17[%c0_104, %c0_105] : memref<1x32xf32, #tpu.memory_space<vmem>>, vector<1x32xf32>
    %209 = vector.broadcast %208 : vector<1x32xf32> to vector<5x32xf32>
    %210 = arith.addf %207, %209 : vector<5x32xf32>
    %211 = arith.addf %132, %210 : vector<5x32xf32>
    %c0_106 = arith.constant 0 : index
    %c0_107 = arith.constant 0 : index
    %c0_108 = arith.constant 0 : index
    %212 = vector.load %arg18[%c0_106, %c0_107, %c0_108] : memref<1x5x32xf32, #tpu.memory_space<vmem>>, vector<1x5x32xf32>
    %213 = vector.shape_cast %212 : vector<1x5x32xf32> to vector<5x32xf32>
    %214 = vector.shape_cast %211 : vector<5x32xf32> to vector<1x5x32xf32>
    tpu.vector_store %arg18[%c0_106, %c0_107, %c0_108], %214 {strides = array<i32>} : memref<1x5x32xf32, #tpu.memory_space<vmem>>, vector<1x5x32xf32>,
    return
  }
  func.func @transform_0(%arg0: i32) -> (i32, i32, i32) {
    %c0_i32 = arith.constant 0 : i32
    %c0_i32_0 = arith.constant 0 : i32
    %c0_i32_1 = arith.constant 0 : i32
    return %arg0, %c0_i32, %c0_i32_0 : i32, i32, i32
  }
  func.func @transform_1(%arg0: i32) -> (i32, i32) {
    %c0_i32 = arith.constant 0 : i32
    %c0_i32_0 = arith.constant 0 : i32
    %c0_i32_1 = arith.constant 0 : i32
    return %c0_i32, %c0_i32_0 : i32, i32
  }
  func.func @transform_2(%arg0: i32) -> (i32, i32) {
    %c0_i32 = arith.constant 0 : i32
    %c0_i32_0 = arith.constant 0 : i32
    %c0_i32_1 = arith.constant 0 : i32
    return %c0_i32, %c0_i32_0 : i32, i32
  }
  func.func @transform_3(%arg0: i32) -> (i32, i32, i32) {
    %c0_i32 = arith.constant 0 : i32
    %c0_i32_0 = arith.constant 0 : i32
    %c0_i32_1 = arith.constant 0 : i32
    %c0_i32_2 = arith.constant 0 : i32
    return %c0_i32, %c0_i32_0, %c0_i32_1 : i32, i32, i32
  }
  func.func @transform_4(%arg0: i32) -> (i32, i32, i32) {
    %c0_i32 = arith.constant 0 : i32
    %c0_i32_0 = arith.constant 0 : i32
    %c0_i32_1 = arith.constant 0 : i32
    %c0_i32_2 = arith.constant 0 : i32
    return %c0_i32, %c0_i32_0, %c0_i32_1 : i32, i32, i32
  }
  func.func @transform_5(%arg0: i32) -> (i32, i32, i32) {
    %c0_i32 = arith.constant 0 : i32
    %c0_i32_0 = arith.constant 0 : i32
    %c0_i32_1 = arith.constant 0 : i32
    %c0_i32_2 = arith.constant 0 : i32
    return %c0_i32, %c0_i32_0, %c0_i32_1 : i32, i32, i32
  }
  func.func @transform_6(%arg0: i32) -> (i32, i32, i32) {
    %c0_i32 = arith.constant 0 : i32
    %c0_i32_0 = arith.constant 0 : i32
    %c0_i32_1 = arith.constant 0 : i32
    %c0_i32_2 = arith.constant 0 : i32
    return %c0_i32, %c0_i32_0, %c0_i32_1 : i32, i32, i32
  }
  func.func @transform_7(%arg0: i32) -> (i32, i32, i32) {
    %c0_i32 = arith.constant 0 : i32
    %c0_i32_0 = arith.constant 0 : i32
    %c0_i32_1 = arith.constant 0 : i32
    %c0_i32_2 = arith.constant 0 : i32
    return %c0_i32, %c0_i32_0, %c0_i32_1 : i32, i32, i32
  }
  func.func @transform_8(%arg0: i32) -> (i32, i32, i32) {
    %c0_i32 = arith.constant 0 : i32
    %c0_i32_0 = arith.constant 0 : i32
    %c0_i32_1 = arith.constant 0 : i32
    %c0_i32_2 = arith.constant 0 : i32
    return %c0_i32, %c0_i32_0, %c0_i32_1 : i32, i32, i32
  }
  func.func @transform_9(%arg0: i32) -> (i32, i32, i32) {
    %c0_i32 = arith.constant 0 : i32
    %c0_i32_0 = arith.constant 0 : i32
    %c0_i32_1 = arith.constant 0 : i32
    %c0_i32_2 = arith.constant 0 : i32
    return %c0_i32, %c0_i32_0, %c0_i32_1 : i32, i32, i32
  }
  func.func @transform_10(%arg0: i32) -> (i32, i32) {
    %c0_i32 = arith.constant 0 : i32
    %c0_i32_0 = arith.constant 0 : i32
    %c0_i32_1 = arith.constant 0 : i32
    return %c0_i32, %c0_i32_0 : i32, i32
  }
  func.func @transform_11(%arg0: i32) -> (i32, i32) {
    %c0_i32 = arith.constant 0 : i32
    %c0_i32_0 = arith.constant 0 : i32
    %c0_i32_1 = arith.constant 0 : i32
    return %c0_i32, %c0_i32_0 : i32, i32
  }
  func.func @transform_12(%arg0: i32) -> (i32, i32) {
    %c0_i32 = arith.constant 0 : i32
    %c0_i32_0 = arith.constant 0 : i32
    %c0_i32_1 = arith.constant 0 : i32
    return %c0_i32, %c0_i32_0 : i32, i32
  }
  func.func @transform_13(%arg0: i32) -> (i32, i32) {
    %c0_i32 = arith.constant 0 : i32
    %c0_i32_0 = arith.constant 0 : i32
    %c0_i32_1 = arith.constant 0 : i32
    return %c0_i32, %c0_i32_0 : i32, i32
  }
  func.func @transform_14(%arg0: i32) -> (i32, i32) {
    %c0_i32 = arith.constant 0 : i32
    %c0_i32_0 = arith.constant 0 : i32
    %c0_i32_1 = arith.constant 0 : i32
    return %c0_i32, %c0_i32_0 : i32, i32
  }
  func.func @transform_15(%arg0: i32) -> (i32, i32) {
    %c0_i32 = arith.constant 0 : i32
    %c0_i32_0 = arith.constant 0 : i32
    %c0_i32_1 = arith.constant 0 : i32
    return %c0_i32, %c0_i32_0 : i32, i32
  }
  func.func @transform_16(%arg0: i32) -> (i32, i32) {
    %c0_i32 = arith.constant 0 : i32
    %c0_i32_0 = arith.constant 0 : i32
    %c0_i32_1 = arith.constant 0 : i32
    return %c0_i32, %c0_i32_0 : i32, i32
  }
  func.func @transform_17(%arg0: i32) -> (i32, i32, i32) {
    %c0_i32 = arith.constant 0 : i32
    %c0_i32_0 = arith.constant 0 : i32
    %c0_i32_1 = arith.constant 0 : i32
    return %arg0, %c0_i32, %c0_i32_0 : i32, i32, i32
  }
}

</mosaic_0001>

<llo_original>
// kernel: _lambda_.7
$region0: #{_lambda_.7}
  #allocation0 [shape = 'u32[]', space=smem, size = 0x4, offset = 0x4, fixed_abs, tag = 'smem constant byte address 0x4 - core index']
  #allocation1 [shape = 'u32[144,128]{1,0:T(1,128)}', space=vmem, size = 0x12000, scoped, tag = 'internal scratch']
  %s0 = inlined_call_operand.vmem [shape: f32[2,32], index: 0, kind: input, shape index: {}]
  %s1 = inlined_call_operand.vmem [shape: f32[1,32], index: 1, kind: input, shape index: {}]
  %s2 = inlined_call_operand.vmem [shape: f32[1,32], index: 2, kind: input, shape index: {}]
  %s3 = inlined_call_operand.vmem [shape: f32[32,16], index: 3, kind: input, shape index: {}]
  %s4 = inlined_call_operand.vmem [shape: f32[1,16], index: 4, kind: input, shape index: {}]
  %s5 = inlined_call_operand.hbm [shape: f32[2,16], index: 5, kind: output, shape index: {}]
  %s6 = sld [smem:[#allocation0]]
  $region30: #{_lambda_.7} parent=0
    _
  %s8 = ssub.s32 1, %s6
  %s9 = scalar_select 0, %s8, %s6
  $region1: #{_lambda_.7} parent=0
    #allocation2 [shape = 'u8[1024]{0}', space=vmem, size = 0x400, scoped, tag = 'output window, operand 0, single buffered']
    #allocation3 [shape = 's32[1]{0}', space=sflag, size = 0x4, scoped, tag = 'scoped memory for _lambda_.7']
    %10 = vsyncpa [#allocation3], 0
    // Predicated region
    $region2: #{_lambda_.7} parent=1 // pred_check
      _
    $region3: #{_lambda_.7} parent=1 // pred_check_branch
      %12 = sbr.rel (0) target = $region5
    $region4: #{_lambda_.7} parent=1 // pred_region
      _
    $region5: #{_lambda_.7} parent=1 // pred_fallthru
      _
    // Predicated region
    $region6: #{_lambda_.7} parent=1 // pred_check
      _
    $region7: #{_lambda_.7} parent=1 // pred_check_branch
      %14 = sbr.rel (0) target = $region9
    $region8: #{_lambda_.7} parent=1 // pred_region
      _
    $region9: #{_lambda_.7} parent=1 // pred_fallthru
      _
    // Predicated region
    $region10: #{_lambda_.7} parent=1 // pred_check
      _
    $region11: #{_lambda_.7} parent=1 // pred_check_branch
      %16 = sbr.rel (0) target = $region13
    $region12: #{_lambda_.7} parent=1 // pred_region
      _
    $region13: #{_lambda_.7} parent=1 // pred_fallthru
      _
    // Predicated region
    $region14: #{_lambda_.7} parent=1 // pred_check
      _
    $region15: #{_lambda_.7} parent=1 // pred_check_branch
      %18 = sbr.rel (0) target = $region17
    $region16: #{_lambda_.7} parent=1 // pred_region
      _
    $region17: #{_lambda_.7} parent=1 // pred_fallthru
      _
    // Predicated region
    $region18: #{_lambda_.7} parent=1 // pred_check
      _
    $region19: #{_lambda_.7} parent=1 // pred_check_branch
      %20 = sbr.rel (0) target = $region21
    $region20: #{_lambda_.7} parent=1 // pred_region
      _
    $region21: #{_lambda_.7} parent=1 // pred_fallthru
      _
    %v22 = vld [vmem:[%s0] sm:$0x3]
    %v23 = vld [vmem:[%s1] sm:$0x1]
    %v24 = vld [vmem:[%s2] sm:$0x1]
    %vm25 = vcmask 254976
    %v26 = vsel %vm25, %v22, 0.0
    %27 = vadd.xlane.f32.xlu0 %v26
    %v28 = vpop.xlane.xlu0 %27
    %v29 = vrcp.pop 32.0
    %v30 = vmul.f32 %v28, %v29
    %v31 = vsub.f32 %v22, %v30
    %v32 = vmul.f32 %v31, %v31
    %v33 = vsel %vm25, %v32, 0.0
    %34 = vadd.xlane.f32.xlu0 %v33
    %v35 = vpop.xlane.xlu0 %34
    %v36 = vmul.f32 %v35, %v29
    %v37 = vadd.f32 %v36, 1e-06
    %v38 = vrsqrt.pop %v37
    %v39 = vmul.f32 %v31, %v38
    %v41 = vlaneseq
    %v42 = vshrl.u32 %v41, 7
    %v43 = vsub.s32 0, %v42
    %v44 = vrot.slane %v23, %v43
    %v46 = vmul.f32 %v39, %v44
    %v48 = vlaneseq
    %v49 = vshrl.u32 %v48, 7
    %v50 = vsub.s32 0, %v49
    %v51 = vrot.slane %v24, %v50
    %v53 = vadd.f32 %v46, %v51
    %v54 = vld [vmem:[%s3] sm:$0xff]
    %v55 = vld [vmem:[%s3 + $0x8] sm:$0xff]
    %v56 = vld [vmem:[%s3 + $0x10] sm:$0xff]
    %v57 = vld [vmem:[%s3 + $0x18] sm:$0xff]
    %v58 = vpack.c.bf16 %v53, %v53
    %v59 = vpack.c.bf16 %v55, %v54
    %v60 = vpack.c.bf16 %v57, %v56
    %v61 = vld [vmem:[%s4] sm:$0x1]
    %v63 = vlaneseq
    %v64 = vshrl.u32 %v63, 7
    %v65 = vsub.s32 0, %v64
    %v66 = vrot.slane %v61, %v65
    %vm68 = vcmask 261120
    %v70 = vsel %vm68, %v58, 0
    %72 = vmatprep.subr.bf16.mxu0 0
    %73 = vmatpush1.bf16.msra.mxu0 %v59
    %74 = vmatprep.subr.bf16.mxu0 0
    %75 = vmatpush1.bf16.msra.mxu0 %v60
    %76 = vmatprep.subr.bf16.mxu0 0
    %77 = vmatpush1.bf16.msra.mxu0 0
    %78 = vmatprep.subr.bf16.mxu0 0
    %79 = vmatpush1.bf16.msra.mxu0 0
    %80 = vmatprep.subr.bf16.mxu0 0
    %81 = vmatpush1.bf16.msra.mxu0 0
    %82 = vmatprep.subr.bf16.mxu0 0
    %83 = vmatpush1.bf16.msra.mxu0 0
    %84 = vmatprep.subr.bf16.mxu0 0
    %85 = vmatpush1.bf16.msra.mxu0 0
    %86 = vmatprep.subr.bf16.mxu0 0
    %87 = vmatpush1.bf16.msra.mxu0 0
    %88 = vmatprep.subr.bf16.mxu0 0
    %89 = vmatpush1.bf16.msra.mxu0 0
    %90 = vmatprep.subr.bf16.mxu0 0
    %91 = vmatpush1.bf16.msra.mxu0 0
    %92 = vmatprep.subr.bf16.mxu0 0
    %93 = vmatpush1.bf16.msra.mxu0 0
    %94 = vmatprep.subr.bf16.mxu0 0
    %95 = vmatpush1.bf16.msra.mxu0 0
    %96 = vmatprep.subr.bf16.mxu0 0
    %97 = vmatpush1.bf16.msra.mxu0 0
    %98 = vmatprep.subr.bf16.mxu0 0
    %99 = vmatpush1.bf16.msra.mxu0 0
    %100 = vmatprep.subr.bf16.mxu0 0
    %101 = vmatpush1.bf16.msra.mxu0 0
    %102 = vmatprep.subr.bf16.mxu0 0
    %103 = vmatpush1.bf16.msra.mxu0 0
    %104 = vmatprep.mubr.bf16.mxu0 0
    %105 = vmatmul.mubr.bf16.gmra.mrb[0].mxu0 %v70
    %v106 = vpop.f32.mrb[0].mxu0
    %v107 = vadd.f32 %v66, %v106
    %v108 = vpop.f32.mrb[0].mxu0
    %v109 = vpop.f32.mrb[0].mxu0
    %v110 = vpop.f32.mrb[0].mxu0
    %111 = vdwg.mxu0
    %vm112 = vcmask 123904
    %113 = vst.msk [vmem:[#allocation2] sm:$0x3] %vm112, %v107
    // Predicated region
    $region22: #{_lambda_.7} parent=1 // pred_check
      _
    $region23: #{_lambda_.7} parent=1 // pred_check_branch
      %115 = sbr.rel (0) target = $region25
    $region24: #{_lambda_.7} parent=1 // pred_region
      %s117 = ssub.s32 32, 32
      %118 = vsyncadd [#allocation3], %s117
      %s120 = sshll.u32 [#allocation2], 4
      %s121 = int_to_ptr.vmem [resolvable:$true] %s120
      %123 = dma.vmem_to_hbm [thread:$0]  %s121, 32, %s5, [#allocation3]
    $region25: #{_lambda_.7} parent=1 // pred_fallthru
      _
    // Predicated region
    $region26: #{_lambda_.7} parent=1 // pred_check
      _
    $region27: #{_lambda_.7} parent=1 // pred_check_branch
      %125 = sbr.rel (0) target = $region29
    $region28: #{_lambda_.7} parent=1 // pred_region
      %126 = dma.done [#allocation3], 32
    $region29: #{_lambda_.7} parent=1 // pred_fallthru
      _
    %127 = vsyncpa [#allocation3], 1

// kernel: _lambda_.4
$region0: #{_lambda_.4}
  #allocation0 [shape = 'u32[]', space=smem, size = 0x4, offset = 0x4, fixed_abs, tag = 'smem constant byte address 0x4 - core index']
  #allocation1 [shape = 'u32[144,128]{1,0:T(1,128)}', space=vmem, size = 0x12000, scoped, tag = 'internal scratch']
  %s0 = inlined_call_operand.vmem [shape: f32[2,5,768], index: 0, kind: input, shape index: {}]
  %s1 = inlined_call_operand.vmem [shape: f32[768,32], index: 1, kind: input, shape index: {}]
  %s2 = inlined_call_operand.vmem [shape: f32[5,32], index: 2, kind: input, shape index: {}]
  %s3 = inlined_call_operand.vmem [shape: f32[2,5,32], index: 3, kind: output, shape index: {}]
  %s4 = sld [smem:[#allocation0]]
  $region45: #{_lambda_.4} parent=0
    _
  %s6 = ssub.s32 1, %s4
  %s7 = scalar_select 0, %s6, %s4
  loop: start=0, step=1, limit=4
  $region2: #{_lambda_.4} parent=0 // loop_pre_header
    _
  $region3: #{_lambda_.4} parent=0 // loop_header
    %s9 = sphi 0, %s13
    %p10 = scmp.ge.s32.totalorder %s9, 4
    %s19 = sphi 0, %s21
    %s22 = sphi 0, %s19
    %s23 = sphi 0, %s22
    %s39 = sphi 0, %s23
    %s43 = sphi 0, %s43
    %s45 = sphi 0, %s43
    %s46 = sphi 0, %s45
    %s60 = sphi 0, %s46
    %s64 = sphi 0, %s64
    %s66 = sphi 0, %s64
    %s67 = sphi 0, %s66
    %s81 = sphi 0, %s67
    %s87 = sphi 0, %s89
    %s90 = sphi 0, %s87
    %s91 = sphi 0, %s90
    %s107 = sphi 0, %s91
  $region4: #{_lambda_.4} parent=0 // loop_header_branch
    %12 = sbr.rel (%p10) target = $region8
  $region5: #{_lambda_.4} parent=0 // loop_body
    %s14 = ssub.s32 %s9, 1
    %s15 = ssub.s32 %s9, 2
    %s16 = sadd.s32 %s9, 1
    %s17 = ssub.s32 %s9, %s16
    %p18 = scmp.eq.s32.totalorder %s17, 0
    %s20 = sadd.s32 %s19, 1
    %s21 = scalar_select %p18, %s19, %s20
    %p24 = pneg %p18
    %p25 = scmp.eq.s32.totalorder %s9, 1
    %p26 = por %p24, %p25
    %p27 = scmp.ne.s32.totalorder %s19, %s22
    %p28 = scmp.eq.s32.totalorder %s9, 0
    %p29 = por %p27, %p28
    %p30 = scmp.ne.s32.totalorder %s19, %s22
    %p31 = scmp.eq.s32.totalorder %s14, 1
    %p32 = por %p30, %p31
    %p33 = scmp.ne.s32.totalorder %s22, %s23
    %p34 = scmp.eq.s32.totalorder %s14, 0
    %p35 = por %p33, %p34
    %p36 = scmp.ne.s32.totalorder %s22, %s23
    %p37 = scmp.eq.s32.totalorder %s15, 1
    %p38 = por %p36, %p37
    %p40 = scmp.ne.s32.totalorder %s23, %s39
    %p41 = scmp.eq.s32.totalorder %s15, 0
    %p42 = por %p40, %p41
    %s44 = sadd.s32 %s43, 1
    %p47 = scmp.eq.s32.totalorder %s9, 1
    %p48 = scmp.ne.s32.totalorder %s43, %s45
    %p49 = scmp.eq.s32.totalorder %s9, 0
    %p50 = por %p48, %p49
    %p51 = scmp.ne.s32.totalorder %s43, %s45
    %p52 = scmp.eq.s32.totalorder %s14, 1
    %p53 = por %p51, %p52
    %p54 = scmp.ne.s32.totalorder %s45, %s46
    %p55 = scmp.eq.s32.totalorder %s14, 0
    %p56 = por %p54, %p55
    %p57 = scmp.ne.s32.totalorder %s45, %s46
    %p58 = scmp.eq.s32.totalorder %s15, 1
    %p59 = por %p57, %p58
    %p61 = scmp.ne.s32.totalorder %s46, %s60
    %p62 = scmp.eq.s32.totalorder %s15, 0
    %p63 = por %p61, %p62
    %s65 = sadd.s32 %s64, 1
    %p68 = scmp.eq.s32.totalorder %s9, 1
    %p69 = scmp.ne.s32.totalorder %s64, %s66
    %p70 = scmp.eq.s32.totalorder %s9, 0
    %p71 = por %p69, %p70
    %p72 = scmp.ne.s32.totalorder %s64, %s66
    %p73 = scmp.eq.s32.totalorder %s14, 1
    %p74 = por %p72, %p73
    %p75 = scmp.ne.s32.totalorder %s66, %s67
    %p76 = scmp.eq.s32.totalorder %s14, 0
    %p77 = por %p75, %p76
    %p78 = scmp.ne.s32.totalorder %s66, %s67
    %p79 = scmp.eq.s32.totalorder %s15, 1
    %p80 = por %p78, %p79
    %p82 = scmp.ne.s32.totalorder %s67, %s81
    %p83 = scmp.eq.s32.totalorder %s15, 0
    %p84 = por %p82, %p83
    %s85 = ssub.s32 %s9, %s16
    %p86 = scmp.eq.s32.totalorder %s85, 0
    %s88 = sadd.s32 %s87, 1
    %s89 = scalar_select %p86, %s87, %s88
    %p92 = pneg %p86
    %p93 = scmp.eq.s32.totalorder %s9, 1
    %p94 = por %p92, %p93
    %p95 = scmp.ne.s32.totalorder %s87, %s90
    %p96 = scmp.eq.s32.totalorder %s9, 0
    %p97 = por %p95, %p96
    %p98 = scmp.ne.s32.totalorder %s87, %s90
    %p99 = scmp.eq.s32.totalorder %s14, 1
    %p100 = por %p98, %p99
    %p101 = scmp.ne.s32.totalorder %s90, %s91
    %p102 = scmp.eq.s32.totalorder %s14, 0
    %p103 = por %p101, %p102
    %p104 = scmp.ne.s32.totalorder %s90, %s91
    %p105 = scmp.eq.s32.totalorder %s15, 1
    %p106 = por %p104, %p105
    %p108 = scmp.ne.s32.totalorder %s91, %s107
    %p109 = scmp.eq.s32.totalorder %s15, 0
    %p110 = por %p108, %p109
    %p111 = scmp.le.s32.totalorder 1, %s9
    %p112 = scmp.lt.s32.totalorder %s9, 3
    %p113 = pnand %p111, %p112
    %p114 = pneg %p113
    // Predicated region
    $region9: #{_lambda_.4} parent=5 // pred_check
      _
    $region10: #{_lambda_.4} parent=5 // pred_check_branch
      %116 = sbr.rel (%p113) target = $region12
    $region11: #{_lambda_.4} parent=5 // pred_region
      %s117 = ssub.s32 %s9, 1
      // Predicated region
      $region13: #{_lambda_.4} parent=11 // pred_check
        %p118 = pneg %p56
      $region14: #{_lambda_.4} parent=11 // pred_check_branch
        %120 = sbr.rel (%p118) target = $region16
      $region15: #{_lambda_.4} parent=11 // pred_region
        _
      $region16: #{_lambda_.4} parent=11 // pred_fallthru
        _
      // Predicated region
      $region17: #{_lambda_.4} parent=11 // pred_check
        %p121 = pneg %p77
      $region18: #{_lambda_.4} parent=11 // pred_check_branch
        %123 = sbr.rel (%p121) target = $region20
      $region19: #{_lambda_.4} parent=11 // pred_region
        _
      $region20: #{_lambda_.4} parent=11 // pred_fallthru
        _
    $region12: #{_lambda_.4} parent=5 // pred_fallthru
      _
    %p124 = scmp.lt.s32.totalorder %s9, 2
    // Predicated region
    $region21: #{_lambda_.4} parent=5 // pred_check
      %p125 = pneg %p124
    $region22: #{_lambda_.4} parent=5 // pred_check_branch
      %127 = sbr.rel (%p125) target = $region24
    $region23: #{_lambda_.4} parent=5 // pred_region
      // Predicated region
      $region25: #{_lambda_.4} parent=23 // pred_check
        %p128 = pneg %p29
      $region26: #{_lambda_.4} parent=23 // pred_check_branch
        %130 = sbr.rel (%p128) target = $region28
      $region27: #{_lambda_.4} parent=23 // pred_region
        %p131 = scmp.lt.s32.totalorder %s9, 1
        %s132 = scalar_select %p131, %s9, 1
        %s133 = smul.addr %s132, 6
        %s134 = smul.addr %s133, 8
        %s135 = scalar_lea.vmem %s0, %s134
      $region28: #{_lambda_.4} parent=23 // pred_fallthru
        _
    $region24: #{_lambda_.4} parent=5 // pred_fallthru
      _
    %p136 = scmp.le.s32.totalorder 1, %s9
    %p137 = scmp.lt.s32.totalorder %s9, 3
    %p138 = pnand %p136, %p137
    %p139 = pneg %p138
    // Predicated region
    $region29: #{_lambda_.4} parent=5 // pred_check
      _
    $region30: #{_lambda_.4} parent=5 // pred_check_branch
      %141 = sbr.rel (%p138) target = $region32
    $region31: #{_lambda_.4} parent=5 // pred_region
      %s142 = ssub.s32 %s9, 1
      %p143 = scmp.lt.s32.totalorder %s14, 1
      %s144 = scalar_select %p143, %s14, 1
      %s145 = smul.addr %s144, 6
      %s146 = smul.addr %s145, 8
      %s147 = scalar_lea.vmem %s0, %s146
      %p148 = pneg %p35
      %p149 = pneg %p32
      %p150 = pneg %p56
      %p151 = pneg %p53
      %p152 = pneg %p77
      %p153 = pneg %p74
      %p154 = pneg %p103
      %p155 = pneg %p100
      %p156 = scmp.lt.s32.totalorder %s14, 1
      %s157 = scalar_select %p156, %s14, 1
      %s158 = smul.addr %s157, 8
      %s159 = scalar_lea.vmem %s3, %s158
      %p160 = scmp.lt.s32.totalorder %s14, 1
      %s161 = scalar_select %p160, %s14, 1
      %s162 = smul.addr %s161, 6
      %s163 = smul.addr %s162, 8
      %s164 = scalar_lea.vmem %s0, %s163
      %p165 = scmp.lt.s32.totalorder %s14, 1
      %s166 = scalar_select %p165, %s14, 1
      %s167 = smul.addr %s166, 8
      %s168 = scalar_lea.vmem %s3, %s167
      %v170 = vld [vmem:[%s164] sm:$0x1f]
      %v171 = vld [vmem:[%s164 + $0x8] sm:$0x1f]
      %v172 = vld [vmem:[%s164 + $0x10] sm:$0x1f]
      %v173 = vld [vmem:[%s164 + $0x18] sm:$0x1f]
      %v174 = vld [vmem:[%s164 + $0x20] sm:$0x1f]
      %v175 = vld [vmem:[%s164 + $0x28] sm:$0x1f]
      %v176 = vld [vmem:[%s1] sm:$0xff]
      %v177 = vld [vmem:[%s1 + $0x8] sm:$0xff]
      %v178 = vld [vmem:[%s1 + $0x10] sm:$0xff]
      %v179 = vld [vmem:[%s1 + $0x18] sm:$0xff]
      %v180 = vld [vmem:[%s1 + $0x20] sm:$0xff]
      %v181 = vld [vmem:[%s1 + $0x28] sm:$0xff]
      %v182 = vld [vmem:[%s1 + $0x30] sm:$0xff]
      %v183 = vld [vmem:[%s1 + $0x38] sm:$0xff]
      %v184 = vld [vmem:[%s1 + $0x40] sm:$0xff]
      %v185 = vld [vmem:[%s1 + $0x48] sm:$0xff]
      %v186 = vld [vmem:[%s1 + $0x50] sm:$0xff]
      %v187 = vld [vmem:[%s1 + $0x58] sm:$0xff]
      %v188 = vld [vmem:[%s1 + $0x60] sm:$0xff]
      %v189 = vld [vmem:[%s1 + $0x68] sm:$0xff]
      %v190 = vld [vmem:[%s1 + $0x70] sm:$0xff]
      %v191 = vld [vmem:[%s1 + $0x78] sm:$0xff]
      %v192 = vld [vmem:[%s1 + $0x80] sm:$0xff]
      %v193 = vld [vmem:[%s1 + $0x88] sm:$0xff]
      %v194 = vld [vmem:[%s1 + $0x90] sm:$0xff]
      %v195 = vld [vmem:[%s1 + $0x98] sm:$0xff]
      %v196 = vld [vmem:[%s1 + $0xa0] sm:$0xff]
      %v197 = vld [vmem:[%s1 + $0xa8] sm:$0xff]
      %v198 = vld [vmem:[%s1 + $0xb0] sm:$0xff]
      %v199 = vld [vmem:[%s1 + $0xb8] sm:$0xff]
      %v200 = vld [vmem:[%s1 + $0xc0] sm:$0xff]
      %v201 = vld [vmem:[%s1 + $0xc8] sm:$0xff]
      %v202 = vld [vmem:[%s1 + $0xd0] sm:$0xff]
      %v203 = vld [vmem:[%s1 + $0xd8] sm:$0xff]
      %v204 = vld [vmem:[%s1 + $0xe0] sm:$0xff]
      %v205 = vld [vmem:[%s1 + $0xe8] sm:$0xff]
      %v206 = vld [vmem:[%s1 + $0xf0] sm:$0xff]
      %v207 = vld [vmem:[%s1 + $0xf8] sm:$0xff]
      %v208 = vld [vmem:[%s1 + $0x100] sm:$0xff]
      %v209 = vld [vmem:[%s1 + $0x108] sm:$0xff]
      %v210 = vld [vmem:[%s1 + $0x110] sm:$0xff]
      %v211 = vld [vmem:[%s1 + $0x118] sm:$0xff]
      %v212 = vld [vmem:[%s1 + $0x120] sm:$0xff]
      %v213 = vld [vmem:[%s1 + $0x128] sm:$0xff]
      %v214 = vld [vmem:[%s1 + $0x130] sm:$0xff]
      %v215 = vld [vmem:[%s1 + $0x138] sm:$0xff]
      %v216 = vld [vmem:[%s1 + $0x140] sm:$0xff]
      %v217 = vld [vmem:[%s1 + $0x148] sm:$0xff]
      %v218 = vld [vmem:[%s1 + $0x150] sm:$0xff]
      %v219 = vld [vmem:[%s1 + $0x158] sm:$0xff]
      %v220 = vld [vmem:[%s1 + $0x160] sm:$0xff]
      %v221 = vld [vmem:[%s1 + $0x168] sm:$0xff]
      %v222 = vld [vmem:[%s1 + $0x170] sm:$0xff]
      %v223 = vld [vmem:[%s1 + $0x178] sm:$0xff]
      %v224 = vld [vmem:[%s1 + $0x180] sm:$0xff]
      %v225 = vld [vmem:[%s1 + $0x188] sm:$0xff]
      %v226 = vld [vmem:[%s1 + $0x190] sm:$0xff]
      %v227 = vld [vmem:[%s1 + $0x198] sm:$0xff]
      %v228 = vld [vmem:[%s1 + $0x1a0] sm:$0xff]
      %v229 = vld [vmem:[%s1 + $0x1a8] sm:$0xff]
      %v230 = vld [vmem:[%s1 + $0x1b0] sm:$0xff]
      %v231 = vld [vmem:[%s1 + $0x1b8] sm:$0xff]
      %v232 = vld [vmem:[%s1 + $0x1c0] sm:$0xff]
      %v233 = vld [vmem:[%s1 + $0x1c8] sm:$0xff]
      %v234 = vld [vmem:[%s1 + $0x1d0] sm:$0xff]
      %v235 = vld [vmem:[%s1 + $0x1d8] sm:$0xff]
      %v236 = vld [vmem:[%s1 + $0x1e0] sm:$0xff]
      %v237 = vld [vmem:[%s1 + $0x1e8] sm:$0xff]
      %v238 = vld [vmem:[%s1 + $0x1f0] sm:$0xff]
      %v239 = vld [vmem:[%s1 + $0x1f8] sm:$0xff]
      %v240 = vld [vmem:[%s1 + $0x200] sm:$0xff]
      %v241 = vld [vmem:[%s1 + $0x208] sm:$0xff]
      %v242 = vld [vmem:[%s1 + $0x210] sm:$0xff]
      %v243 = vld [vmem:[%s1 + $0x218] sm:$0xff]
      %v244 = vld [vmem:[%s1 + $0x220] sm:$0xff]
      %v245 = vld [vmem:[%s1 + $0x228] sm:$0xff]
      %v246 = vld [vmem:[%s1 + $0x230] sm:$0xff]
      %v247 = vld [vmem:[%s1 + $0x238] sm:$0xff]
      %v248 = vld [vmem:[%s1 + $0x240] sm:$0xff]
      %v249 = vld [vmem:[%s1 + $0x248] sm:$0xff]
      %v250 = vld [vmem:[%s1 + $0x250] sm:$0xff]
      %v251 = vld [vmem:[%s1 + $0x258] sm:$0xff]
      %v252 = vld [vmem:[%s1 + $0x260] sm:$0xff]
      %v253 = vld [vmem:[%s1 + $0x268] sm:$0xff]
      %v254 = vld [vmem:[%s1 + $0x270] sm:$0xff]
      %v255 = vld [vmem:[%s1 + $0x278] sm:$0xff]
      %v256 = vld [vmem:[%s1 + $0x280] sm:$0xff]
      %v257 = vld [vmem:[%s1 + $0x288] sm:$0xff]
      %v258 = vld [vmem:[%s1 + $0x290] sm:$0xff]
      %v259 = vld [vmem:[%s1 + $0x298] sm:$0xff]
      %v260 = vld [vmem:[%s1 + $0x2a0] sm:$0xff]
      %v261 = vld [vmem:[%s1 + $0x2a8] sm:$0xff]
      %v262 = vld [vmem:[%s1 + $0x2b0] sm:$0xff]
      %v263 = vld [vmem:[%s1 + $0x2b8] sm:$0xff]
      %v264 = vld [vmem:[%s1 + $0x2c0] sm:$0xff]
      %v265 = vld [vmem:[%s1 + $0x2c8] sm:$0xff]
      %v266 = vld [vmem:[%s1 + $0x2d0] sm:$0xff]
      %v267 = vld [vmem:[%s1 + $0x2d8] sm:$0xff]
      %v268 = vld [vmem:[%s1 + $0x2e0] sm:$0xff]
      %v269 = vld [vmem:[%s1 + $0x2e8] sm:$0xff]
      %v270 = vld [vmem:[%s1 + $0x2f0] sm:$0xff]
      %v271 = vld [vmem:[%s1 + $0x2f8] sm:$0xff]
      %v272 = vpack.c.bf16 %v170, %v170
      %v273 = vpack.c.bf16 %v171, %v171
      %v274 = vpack.c.bf16 %v172, %v172
      %v275 = vpack.c.bf16 %v173, %v173
      %v276 = vpack.c.bf16 %v174, %v174
      %v277 = vpack.c.bf16 %v175, %v175
      %v278 = vpack.c.bf16 %v177, %v176
      %v279 = vpack.c.bf16 %v179, %v178
      %v280 = vpack.c.bf16 %v181, %v180
      %v281 = vpack.c.bf16 %v183, %v182
      %v282 = vpack.c.bf16 %v185, %v184
      %v283 = vpack.c.bf16 %v187, %v186
      %v284 = vpack.c.bf16 %v189, %v188
      %v285 = vpack.c.bf16 %v191, %v190
      %v286 = vpack.c.bf16 %v193, %v192
      %v287 = vpack.c.bf16 %v195, %v194
      %v288 = vpack.c.bf16 %v197, %v196
      %v289 = vpack.c.bf16 %v199, %v198
      %v290 = vpack.c.bf16 %v201, %v200
      %v291 = vpack.c.bf16 %v203, %v202
      %v292 = vpack.c.bf16 %v205, %v204
      %v293 = vpack.c.bf16 %v207, %v206
      %v294 = vpack.c.bf16 %v209, %v208
      %v295 = vpack.c.bf16 %v211, %v210
      %v296 = vpack.c.bf16 %v213, %v212
      %v297 = vpack.c.bf16 %v215, %v214
      %v298 = vpack.c.bf16 %v217, %v216
      %v299 = vpack.c.bf16 %v219, %v218
      %v300 = vpack.c.bf16 %v221, %v220
      %v301 = vpack.c.bf16 %v223, %v222
      %v302 = vpack.c.bf16 %v225, %v224
      %v303 = vpack.c.bf16 %v227, %v226
      %v304 = vpack.c.bf16 %v229, %v228
      %v305 = vpack.c.bf16 %v231, %v230
      %v306 = vpack.c.bf16 %v233, %v232
      %v307 = vpack.c.bf16 %v235, %v234
      %v308 = vpack.c.bf16 %v237, %v236
      %v309 = vpack.c.bf16 %v239, %v238
      %v310 = vpack.c.bf16 %v241, %v240
      %v311 = vpack.c.bf16 %v243, %v242
      %v312 = vpack.c.bf16 %v245, %v244
      %v313 = vpack.c.bf16 %v247, %v246
      %v314 = vpack.c.bf16 %v249, %v248
      %v315 = vpack.c.bf16 %v251, %v250
      %v316 = vpack.c.bf16 %v253, %v252
      %v317 = vpack.c.bf16 %v255, %v254
      %v318 = vpack.c.bf16 %v257, %v256
      %v319 = vpack.c.bf16 %v259, %v258
      %v320 = vpack.c.bf16 %v261, %v260
      %v321 = vpack.c.bf16 %v263, %v262
      %v322 = vpack.c.bf16 %v265, %v264
      %v323 = vpack.c.bf16 %v267, %v266
      %v324 = vpack.c.bf16 %v269, %v268
      %v325 = vpack.c.bf16 %v271, %v270
      %v326 = vld [vmem:[%s2] sm:$0x1f]
      %327 = vmatprep.subr.bf16.mxu0 0
      %328 = vmatpush1.bf16.msra.mxu0 %v278
      %329 = vmatprep.subr.bf16.mxu0 0
      %330 = vmatpush1.bf16.msra.mxu0 %v279
      %331 = vmatprep.subr.bf16.mxu0 0
      %332 = vmatpush1.bf16.msra.mxu0 %v280
      %333 = vmatprep.subr.bf16.mxu0 0
      %334 = vmatpush1.bf16.msra.mxu0 %v281
      %335 = vmatprep.subr.bf16.mxu0 0
      %336 = vmatpush1.bf16.msra.mxu0 %v282
      %337 = vmatprep.subr.bf16.mxu0 0
      %338 = vmatpush1.bf16.msra.mxu0 %v283
      %339 = vmatprep.subr.bf16.mxu0 0
      %340 = vmatpush1.bf16.msra.mxu0 %v284
      %341 = vmatprep.subr.bf16.mxu0 0
      %342 = vmatpush1.bf16.msra.mxu0 %v285
      %343 = vmatprep.subr.bf16.mxu0 0
      %344 = vmatpush1.bf16.msra.mxu0 %v286
      %345 = vmatprep.subr.bf16.mxu0 0
      %346 = vmatpush1.bf16.msra.mxu0 %v287
      %347 = vmatprep.subr.bf16.mxu0 0
      %348 = vmatpush1.bf16.msra.mxu0 %v288
      %349 = vmatprep.subr.bf16.mxu0 0
      %350 = vmatpush1.bf16.msra.mxu0 %v289
      %351 = vmatprep.subr.bf16.mxu0 0
      %352 = vmatpush1.bf16.msra.mxu0 %v290
      %353 = vmatprep.subr.bf16.mxu0 0
      %354 = vmatpush1.bf16.msra.mxu0 %v291
      %355 = vmatprep.subr.bf16.mxu0 0
      %356 = vmatpush1.bf16.msra.mxu0 %v292
      %357 = vmatprep.subr.bf16.mxu0 0
      %358 = vmatpush1.bf16.msra.mxu0 %v293
      %359 = vmatprep.mubr.bf16.mxu0 %v273
      %360 = vmatmul.mubr.bf16.gmra.mrb[0].mxu0 %v272
      %v361 = vpop.f32.mrb[0].mxu0
      %v362 = vadd.f32 %v326, %v361
      %v363 = vpop.f32.mrb[0].mxu0
      %v364 = vpop.f32.mrb[0].mxu0
      %v365 = vpop.f32.mrb[0].mxu0
      %366 = vdwg.mxu0
      %367 = vmatprep.subr.bf16.mxu0 0
      %368 = vmatpush1.bf16.msra.mxu0 %v294
      %369 = vmatprep.subr.bf16.mxu0 0
      %370 = vmatpush1.bf16.msra.mxu0 %v295
      %371 = vmatprep.subr.bf16.mxu0 0
      %372 = vmatpush1.bf16.msra.mxu0 %v296
      %373 = vmatprep.subr.bf16.mxu0 0
      %374 = vmatpush1.bf16.msra.mxu0 %v297
      %375 = vmatprep.subr.bf16.mxu0 0
      %376 = vmatpush1.bf16.msra.mxu0 %v298
      %377 = vmatprep.subr.bf16.mxu0 0
      %378 = vmatpush1.bf16.msra.mxu0 %v299
      %379 = vmatprep.subr.bf16.mxu0 0
      %380 = vmatpush1.bf16.msra.mxu0 %v300
      %381 = vmatprep.subr.bf16.mxu0 0
      %382 = vmatpush1.bf16.msra.mxu0 %v301
      %383 = vmatprep.subr.bf16.mxu0 0
      %384 = vmatpush1.bf16.msra.mxu0 %v302
      %385 = vmatprep.subr.bf16.mxu0 0
      %386 = vmatpush1.bf16.msra.mxu0 %v303
      %387 = vmatprep.subr.bf16.mxu0 0
      %388 = vmatpush1.bf16.msra.mxu0 %v304
      %389 = vmatprep.subr.bf16.mxu0 0
      %390 = vmatpush1.bf16.msra.mxu0 %v305
      %391 = vmatprep.subr.bf16.mxu0 0
      %392 = vmatpush1.bf16.msra.mxu0 %v306
      %393 = vmatprep.subr.bf16.mxu0 0
      %394 = vmatpush1.bf16.msra.mxu0 %v307
      %395 = vmatprep.subr.bf16.mxu0 0
      %396 = vmatpush1.bf16.msra.mxu0 %v308
      %397 = vmatprep.subr.bf16.mxu0 0
      %398 = vmatpush1.bf16.msra.mxu0 %v309
      %399 = vmatprep.mubr.bf16.mxu0 %v275
      %400 = vmatmul.mubr.bf16.gmra.mrb[0].mxu0 %v274
      %v401 = vpop.f32.mrb[0].mxu0
      %v402 = vadd.f32 %v362, %v401
      %v403 = vpop.f32.mrb[0].mxu0
      %v404 = vpop.f32.mrb[0].mxu0
      %v405 = vpop.f32.mrb[0].mxu0
      %406 = vdwg.mxu0
      %407 = vmatprep.subr.bf16.mxu0 0
      %408 = vmatpush1.bf16.msra.mxu0 %v310
      %409 = vmatprep.subr.bf16.mxu0 0
      %410 = vmatpush1.bf16.msra.mxu0 %v311
      %411 = vmatprep.subr.bf16.mxu0 0
      %412 = vmatpush1.bf16.msra.mxu0 %v312
      %413 = vmatprep.subr.bf16.mxu0 0
      %414 = vmatpush1.bf16.msra.mxu0 %v313
      %415 = vmatprep.subr.bf16.mxu0 0
      %416 = vmatpush1.bf16.msra.mxu0 %v314
      %417 = vmatprep.subr.bf16.mxu0 0
      %418 = vmatpush1.bf16.msra.mxu0 %v315
      %419 = vmatprep.subr.bf16.mxu0 0
      %420 = vmatpush1.bf16.msra.mxu0 %v316
      %421 = vmatprep.subr.bf16.mxu0 0
      %422 = vmatpush1.bf16.msra.mxu0 %v317
      %423 = vmatprep.subr.bf16.mxu0 0
      %424 = vmatpush1.bf16.msra.mxu0 %v318
      %425 = vmatprep.subr.bf16.mxu0 0
      %426 = vmatpush1.bf16.msra.mxu0 %v319
      %427 = vmatprep.subr.bf16.mxu0 0
      %428 = vmatpush1.bf16.msra.mxu0 %v320
      %429 = vmatprep.subr.bf16.mxu0 0
      %430 = vmatpush1.bf16.msra.mxu0 %v321
      %431 = vmatprep.subr.bf16.mxu0 0
      %432 = vmatpush1.bf16.msra.mxu0 %v322
      %433 = vmatprep.subr.bf16.mxu0 0
      %434 = vmatpush1.bf16.msra.mxu0 %v323
      %435 = vmatprep.subr.bf16.mxu0 0
      %436 = vmatpush1.bf16.msra.mxu0 %v324
      %437 = vmatprep.subr.bf16.mxu0 0
      %438 = vmatpush1.bf16.msra.mxu0 %v325
      %439 = vmatprep.mubr.bf16.mxu0 %v277
      %440 = vmatmul.mubr.bf16.gmra.mrb[0].mxu0 %v276
      %v441 = vpop.f32.mrb[0].mxu0
      %v442 = vadd.f32 %v402, %v441
      %v443 = vpop.f32.mrb[0].mxu0
      %v444 = vpop.f32.mrb[0].mxu0
      %v445 = vpop.f32.mrb[0].mxu0
      %446 = vdwg.mxu0
      %vm447 = vcmask 258048
      %448 = vst.msk [vmem:[%s168] sm:$0x1f] %vm447, %v442
      %p449 = scmp.lt.s32.totalorder %s14, 1
      %s450 = scalar_select %p449, %s14, 1
      %s451 = smul.addr %s450, 8
      %s452 = scalar_lea.vmem %s3, %s451
      // Predicated region
      $region33: #{_lambda_.4} parent=31 // pred_check
        %p453 = pneg %p100
      $region34: #{_lambda_.4} parent=31 // pred_check_branch
        %455 = sbr.rel (%p453) target = $region36
      $region35: #{_lambda_.4} parent=31 // pred_region
        _
      $region36: #{_lambda_.4} parent=31 // pred_fallthru
        _
    $region32: #{_lambda_.4} parent=5 // pred_fallthru
      _
    %p456 = scmp.le.s32.totalorder 2, %s9
    // Predicated region
    $region37: #{_lambda_.4} parent=5 // pred_check
      %p457 = pneg %p456
    $region38: #{_lambda_.4} parent=5 // pred_check_branch
      %459 = sbr.rel (%p457) target = $region40
    $region39: #{_lambda_.4} parent=5 // pred_region
      %s460 = ssub.s32 %s9, 2
      // Predicated region
      $region41: #{_lambda_.4} parent=39 // pred_check
        %p461 = pneg %p106
      $region42: #{_lambda_.4} parent=39 // pred_check_branch
        %463 = sbr.rel (%p461) target = $region44
      $region43: #{_lambda_.4} parent=39 // pred_region
        %p464 = scmp.lt.s32.totalorder %s15, 1
        %s465 = scalar_select %p464, %s15, 1
        %s466 = smul.addr %s465, 8
        %s467 = scalar_lea.vmem %s3, %s466
      $region44: #{_lambda_.4} parent=39 // pred_fallthru
        _
    $region40: #{_lambda_.4} parent=5 // pred_fallthru
      _
  $region6: #{_lambda_.4} parent=0 // loop_footer
    %s13 = sadd.s32 1, %s9
  $region7: #{_lambda_.4} parent=0 // loop_footer_branch
    %8 = sbr.rel target = $region3
  $region8: #{_lambda_.4} parent=0 // loop_exit
    _

// kernel: _lambda_.5
$region0: #{_lambda_.5}
  #allocation0 [shape = 'u32[]', space=smem, size = 0x4, offset = 0x4, fixed_abs, tag = 'smem constant byte address 0x4 - core index']
  #allocation1 [shape = 'u32[144,128]{1,0:T(1,128)}', space=vmem, size = 0x12000, scoped, tag = 'internal scratch']
  %s0 = inlined_call_operand.vmem [shape: f32[2,5,32], index: 0, kind: input, shape index: {}]
  %s1 = inlined_call_operand.vmem [shape: f32[1,32], index: 1, kind: input, shape index: {}, may-alias: {1,11}]
  %s2 = inlined_call_operand.vmem [shape: f32[1,32], index: 2, kind: input, shape index: {}, may-alias: {2,10,12,16}]
  %s3 = inlined_call_operand.vmem [shape: f32[2,32,16], index: 3, kind: input, shape index: {}]
  %s4 = inlined_call_operand.vmem [shape: f32[2,1,16], index: 4, kind: input, shape index: {}, may-alias: {4,6,8}]
  %s5 = inlined_call_operand.vmem [shape: f32[2,32,16], index: 5, kind: input, shape index: {}]
  %s6 = inlined_call_operand.vmem [shape: f32[2,1,16], index: 6, kind: input, shape index: {}, may-alias: {4,6,8}]
  %s7 = inlined_call_operand.vmem [shape: f32[2,32,16], index: 7, kind: input, shape index: {}]
  %s8 = inlined_call_operand.vmem [shape: f32[2,1,16], index: 8, kind: input, shape index: {}, may-alias: {4,6,8}]
  %s9 = inlined_call_operand.vmem [shape: f32[2,16,32], index: 9, kind: input, shape index: {}]
  %s10 = inlined_call_operand.vmem [shape: f32[1,32], index: 10, kind: input, shape index: {}, may-alias: {2,10,12,16}]
  %s11 = inlined_call_operand.vmem [shape: f32[1,32], index: 11, kind: input, shape index: {}, may-alias: {1,11}]
  %s12 = inlined_call_operand.vmem [shape: f32[1,32], index: 12, kind: input, shape index: {}, may-alias: {2,10,12,16}]
  %s13 = inlined_call_operand.vmem [shape: f32[32,128], index: 13, kind: input, shape index: {}]
  %s14 = inlined_call_operand.vmem [shape: f32[1,128], index: 14, kind: input, shape index: {}]
  %s15 = inlined_call_operand.vmem [shape: f32[128,32], index: 15, kind: input, shape index: {}]
  %s16 = inlined_call_operand.vmem [shape: f32[1,32], index: 16, kind: input, shape index: {}, may-alias: {2,10,12,16}]
  %s17 = inlined_call_operand.vmem [shape: f32[2,5,32], index: 17, kind: output, shape index: {}]
  %s18 = sld [smem:[#allocation0]]
  $region101: #{_lambda_.5} parent=0
    _
  %s20 = ssub.s32 1, %s18
  %s21 = scalar_select 0, %s20, %s18
  loop: start=0, step=1, limit=4
  $region2: #{_lambda_.5} parent=0 // loop_pre_header
    _
  $region3: #{_lambda_.5} parent=0 // loop_header
    %s23 = sphi 0, %s27
    %p24 = scmp.ge.s32.totalorder %s23, 4
    %s33 = sphi 0, %s35
    %s36 = sphi 0, %s33
    %s37 = sphi 0, %s36
    %s53 = sphi 0, %s37
    %s57 = sphi 0, %s57
    %s59 = sphi 0, %s57
    %s60 = sphi 0, %s59
    %s74 = sphi 0, %s60
    %s78 = sphi 0, %s78
    %s80 = sphi 0, %s78
    %s81 = sphi 0, %s80
    %s95 = sphi 0, %s81
    %s99 = sphi 0, %s99
    %s101 = sphi 0, %s99
    %s102 = sphi 0, %s101
    %s116 = sphi 0, %s102
    %s120 = sphi 0, %s120
    %s122 = sphi 0, %s120
    %s123 = sphi 0, %s122
    %s137 = sphi 0, %s123
    %s141 = sphi 0, %s141
    %s143 = sphi 0, %s141
    %s144 = sphi 0, %s143
    %s158 = sphi 0, %s144
    %s162 = sphi 0, %s162
    %s164 = sphi 0, %s162
    %s165 = sphi 0, %s164
    %s179 = sphi 0, %s165
    %s183 = sphi 0, %s183
    %s185 = sphi 0, %s183
    %s186 = sphi 0, %s185
    %s200 = sphi 0, %s186
    %s204 = sphi 0, %s204
    %s206 = sphi 0, %s204
    %s207 = sphi 0, %s206
    %s221 = sphi 0, %s207
    %s225 = sphi 0, %s225
    %s227 = sphi 0, %s225
    %s228 = sphi 0, %s227
    %s242 = sphi 0, %s228
    %s246 = sphi 0, %s246
    %s248 = sphi 0, %s246
    %s249 = sphi 0, %s248
    %s263 = sphi 0, %s249
    %s267 = sphi 0, %s267
    %s269 = sphi 0, %s267
    %s270 = sphi 0, %s269
    %s284 = sphi 0, %s270
    %s288 = sphi 0, %s288
    %s290 = sphi 0, %s288
    %s291 = sphi 0, %s290
    %s305 = sphi 0, %s291
    %s309 = sphi 0, %s309
    %s311 = sphi 0, %s309
    %s312 = sphi 0, %s311
    %s326 = sphi 0, %s312
    %s330 = sphi 0, %s330
    %s332 = sphi 0, %s330
    %s333 = sphi 0, %s332
    %s347 = sphi 0, %s333
    %s351 = sphi 0, %s351
    %s353 = sphi 0, %s351
    %s354 = sphi 0, %s353
    %s368 = sphi 0, %s354
    %s372 = sphi 0, %s372
    %s374 = sphi 0, %s372
    %s375 = sphi 0, %s374
    %s389 = sphi 0, %s375
    %s395 = sphi 0, %s397
    %s398 = sphi 0, %s395
    %s399 = sphi 0, %s398
    %s415 = sphi 0, %s399
  $region4: #{_lambda_.5} parent=0 // loop_header_branch
    %26 = sbr.rel (%p24) target = $region8
  $region5: #{_lambda_.5} parent=0 // loop_body
    %s28 = ssub.s32 %s23, 1
    %s29 = ssub.s32 %s23, 2
    %s30 = sadd.s32 %s23, 1
    %s31 = ssub.s32 %s23, %s30
    %p32 = scmp.eq.s32.totalorder %s31, 0
    %s34 = sadd.s32 %s33, 1
    %s35 = scalar_select %p32, %s33, %s34
    %p38 = pneg %p32
    %p39 = scmp.eq.s32.totalorder %s23, 1
    %p40 = por %p38, %p39
    %p41 = scmp.ne.s32.totalorder %s33, %s36
    %p42 = scmp.eq.s32.totalorder %s23, 0
    %p43 = por %p41, %p42
    %p44 = scmp.ne.s32.totalorder %s33, %s36
    %p45 = scmp.eq.s32.totalorder %s28, 1
    %p46 = por %p44, %p45
    %p47 = scmp.ne.s32.totalorder %s36, %s37
    %p48 = scmp.eq.s32.totalorder %s28, 0
    %p49 = por %p47, %p48
    %p50 = scmp.ne.s32.totalorder %s36, %s37
    %p51 = scmp.eq.s32.totalorder %s29, 1
    %p52 = por %p50, %p51
    %p54 = scmp.ne.s32.totalorder %s37, %s53
    %p55 = scmp.eq.s32.totalorder %s29, 0
    %p56 = por %p54, %p55
    %s58 = sadd.s32 %s57, 1
    %p61 = scmp.eq.s32.totalorder %s23, 1
    %p62 = scmp.ne.s32.totalorder %s57, %s59
    %p63 = scmp.eq.s32.totalorder %s23, 0
    %p64 = por %p62, %p63
    %p65 = scmp.ne.s32.totalorder %s57, %s59
    %p66 = scmp.eq.s32.totalorder %s28, 1
    %p67 = por %p65, %p66
    %p68 = scmp.ne.s32.totalorder %s59, %s60
    %p69 = scmp.eq.s32.totalorder %s28, 0
    %p70 = por %p68, %p69
    %p71 = scmp.ne.s32.totalorder %s59, %s60
    %p72 = scmp.eq.s32.totalorder %s29, 1
    %p73 = por %p71, %p72
    %p75 = scmp.ne.s32.totalorder %s60, %s74
    %p76 = scmp.eq.s32.totalorder %s29, 0
    %p77 = por %p75, %p76
    %s79 = sadd.s32 %s78, 1
    %p82 = scmp.eq.s32.totalorder %s23, 1
    %p83 = scmp.ne.s32.totalorder %s78, %s80
    %p84 = scmp.eq.s32.totalorder %s23, 0
    %p85 = por %p83, %p84
    %p86 = scmp.ne.s32.totalorder %s78, %s80
    %p87 = scmp.eq.s32.totalorder %s28, 1
    %p88 = por %p86, %p87
    %p89 = scmp.ne.s32.totalorder %s80, %s81
    %p90 = scmp.eq.s32.totalorder %s28, 0
    %p91 = por %p89, %p90
    %p92 = scmp.ne.s32.totalorder %s80, %s81
    %p93 = scmp.eq.s32.totalorder %s29, 1
    %p94 = por %p92, %p93
    %p96 = scmp.ne.s32.totalorder %s81, %s95
    %p97 = scmp.eq.s32.totalorder %s29, 0
    %p98 = por %p96, %p97
    %s100 = sadd.s32 %s99, 1
    %p103 = scmp.eq.s32.totalorder %s23, 1
    %p104 = scmp.ne.s32.totalorder %s99, %s101
    %p105 = scmp.eq.s32.totalorder %s23, 0
    %p106 = por %p104, %p105
    %p107 = scmp.ne.s32.totalorder %s99, %s101
    %p108 = scmp.eq.s32.totalorder %s28, 1
    %p109 = por %p107, %p108
    %p110 = scmp.ne.s32.totalorder %s101, %s102
    %p111 = scmp.eq.s32.totalorder %s28, 0
    %p112 = por %p110, %p111
    %p113 = scmp.ne.s32.totalorder %s101, %s102
    %p114 = scmp.eq.s32.totalorder %s29, 1
    %p115 = por %p113, %p114
    %p117 = scmp.ne.s32.totalorder %s102, %s116
    %p118 = scmp.eq.s32.totalorder %s29, 0
    %p119 = por %p117, %p118
    %s121 = sadd.s32 %s120, 1
    %p124 = scmp.eq.s32.totalorder %s23, 1
    %p125 = scmp.ne.s32.totalorder %s120, %s122
    %p126 = scmp.eq.s32.totalorder %s23, 0
    %p127 = por %p125, %p126
    %p128 = scmp.ne.s32.totalorder %s120, %s122
    %p129 = scmp.eq.s32.totalorder %s28, 1
    %p130 = por %p128, %p129
    %p131 = scmp.ne.s32.totalorder %s122, %s123
    %p132 = scmp.eq.s32.totalorder %s28, 0
    %p133 = por %p131, %p132
    %p134 = scmp.ne.s32.totalorder %s122, %s123
    %p135 = scmp.eq.s32.totalorder %s29, 1
    %p136 = por %p134, %p135
    %p138 = scmp.ne.s32.totalorder %s123, %s137
    %p139 = scmp.eq.s32.totalorder %s29, 0
    %p140 = por %p138, %p139
    %s142 = sadd.s32 %s141, 1
    %p145 = scmp.eq.s32.totalorder %s23, 1
    %p146 = scmp.ne.s32.totalorder %s141, %s143
    %p147 = scmp.eq.s32.totalorder %s23, 0
    %p148 = por %p146, %p147
    %p149 = scmp.ne.s32.totalorder %s141, %s143
    %p150 = scmp.eq.s32.totalorder %s28, 1
    %p151 = por %p149, %p150
    %p152 = scmp.ne.s32.totalorder %s143, %s144
    %p153 = scmp.eq.s32.totalorder %s28, 0
    %p154 = por %p152, %p153
    %p155 = scmp.ne.s32.totalorder %s143, %s144
    %p156 = scmp.eq.s32.totalorder %s29, 1
    %p157 = por %p155, %p156
    %p159 = scmp.ne.s32.totalorder %s144, %s158
    %p160 = scmp.eq.s32.totalorder %s29, 0
    %p161 = por %p159, %p160
    %s163 = sadd.s32 %s162, 1
    %p166 = scmp.eq.s32.totalorder %s23, 1
    %p167 = scmp.ne.s32.totalorder %s162, %s164
    %p168 = scmp.eq.s32.totalorder %s23, 0
    %p169 = por %p167, %p168
    %p170 = scmp.ne.s32.totalorder %s162, %s164
    %p171 = scmp.eq.s32.totalorder %s28, 1
    %p172 = por %p170, %p171
    %p173 = scmp.ne.s32.totalorder %s164, %s165
    %p174 = scmp.eq.s32.totalorder %s28, 0
    %p175 = por %p173, %p174
    %p176 = scmp.ne.s32.totalorder %s164, %s165
    %p177 = scmp.eq.s32.totalorder %s29, 1
    %p178 = por %p176, %p177
    %p180 = scmp.ne.s32.totalorder %s165, %s179
    %p181 = scmp.eq.s32.totalorder %s29, 0
    %p182 = por %p180, %p181
    %s184 = sadd.s32 %s183, 1
    %p187 = scmp.eq.s32.totalorder %s23, 1
    %p188 = scmp.ne.s32.totalorder %s183, %s185
    %p189 = scmp.eq.s32.totalorder %s23, 0
    %p190 = por %p188, %p189
    %p191 = scmp.ne.s32.totalorder %s183, %s185
    %p192 = scmp.eq.s32.totalorder %s28, 1
    %p193 = por %p191, %p192
    %p194 = scmp.ne.s32.totalorder %s185, %s186
    %p195 = scmp.eq.s32.totalorder %s28, 0
    %p196 = por %p194, %p195
    %p197 = scmp.ne.s32.totalorder %s185, %s186
    %p198 = scmp.eq.s32.totalorder %s29, 1
    %p199 = por %p197, %p198
    %p201 = scmp.ne.s32.totalorder %s186, %s200
    %p202 = scmp.eq.s32.totalorder %s29, 0
    %p203 = por %p201, %p202
    %s205 = sadd.s32 %s204, 1
    %p208 = scmp.eq.s32.totalorder %s23, 1
    %p209 = scmp.ne.s32.totalorder %s204, %s206
    %p210 = scmp.eq.s32.totalorder %s23, 0
    %p211 = por %p209, %p210
    %p212 = scmp.ne.s32.totalorder %s204, %s206
    %p213 = scmp.eq.s32.totalorder %s28, 1
    %p214 = por %p212, %p213
    %p215 = scmp.ne.s32.totalorder %s206, %s207
    %p216 = scmp.eq.s32.totalorder %s28, 0
    %p217 = por %p215, %p216
    %p218 = scmp.ne.s32.totalorder %s206, %s207
    %p219 = scmp.eq.s32.totalorder %s29, 1
    %p220 = por %p218, %p219
    %p222 = scmp.ne.s32.totalorder %s207, %s221
    %p223 = scmp.eq.s32.totalorder %s29, 0
    %p224 = por %p222, %p223
    %s226 = sadd.s32 %s225, 1
    %p229 = scmp.eq.s32.totalorder %s23, 1
    %p230 = scmp.ne.s32.totalorder %s225, %s227
    %p231 = scmp.eq.s32.totalorder %s23, 0
    %p232 = por %p230, %p231
    %p233 = scmp.ne.s32.totalorder %s225, %s227
    %p234 = scmp.eq.s32.totalorder %s28, 1
    %p235 = por %p233, %p234
    %p236 = scmp.ne.s32.totalorder %s227, %s228
    %p237 = scmp.eq.s32.totalorder %s28, 0
    %p238 = por %p236, %p237
    %p239 = scmp.ne.s32.totalorder %s227, %s228
    %p240 = scmp.eq.s32.totalorder %s29, 1
    %p241 = por %p239, %p240
    %p243 = scmp.ne.s32.totalorder %s228, %s242
    %p244 = scmp.eq.s32.totalorder %s29, 0
    %p245 = por %p243, %p244
    %s247 = sadd.s32 %s246, 1
    %p250 = scmp.eq.s32.totalorder %s23, 1
    %p251 = scmp.ne.s32.totalorder %s246, %s248
    %p252 = scmp.eq.s32.totalorder %s23, 0
    %p253 = por %p251, %p252
    %p254 = scmp.ne.s32.totalorder %s246, %s248
    %p255 = scmp.eq.s32.totalorder %s28, 1
    %p256 = por %p254, %p255
    %p257 = scmp.ne.s32.totalorder %s248, %s249
    %p258 = scmp.eq.s32.totalorder %s28, 0
    %p259 = por %p257, %p258
    %p260 = scmp.ne.s32.totalorder %s248, %s249
    %p261 = scmp.eq.s32.totalorder %s29, 1
    %p262 = por %p260, %p261
    %p264 = scmp.ne.s32.totalorder %s249, %s263
    %p265 = scmp.eq.s32.totalorder %s29, 0
    %p266 = por %p264, %p265
    %s268 = sadd.s32 %s267, 1
    %p271 = scmp.eq.s32.totalorder %s23, 1
    %p272 = scmp.ne.s32.totalorder %s267, %s269
    %p273 = scmp.eq.s32.totalorder %s23, 0
    %p274 = por %p272, %p273
    %p275 = scmp.ne.s32.totalorder %s267, %s269
    %p276 = scmp.eq.s32.totalorder %s28, 1
    %p277 = por %p275, %p276
    %p278 = scmp.ne.s32.totalorder %s269, %s270
    %p279 = scmp.eq.s32.totalorder %s28, 0
    %p280 = por %p278, %p279
    %p281 = scmp.ne.s32.totalorder %s269, %s270
    %p282 = scmp.eq.s32.totalorder %s29, 1
    %p283 = por %p281, %p282
    %p285 = scmp.ne.s32.totalorder %s270, %s284
    %p286 = scmp.eq.s32.totalorder %s29, 0
    %p287 = por %p285, %p286
    %s289 = sadd.s32 %s288, 1
    %p292 = scmp.eq.s32.totalorder %s23, 1
    %p293 = scmp.ne.s32.totalorder %s288, %s290
    %p294 = scmp.eq.s32.totalorder %s23, 0
    %p295 = por %p293, %p294
    %p296 = scmp.ne.s32.totalorder %s288, %s290
    %p297 = scmp.eq.s32.totalorder %s28, 1
    %p298 = por %p296, %p297
    %p299 = scmp.ne.s32.totalorder %s290, %s291
    %p300 = scmp.eq.s32.totalorder %s28, 0
    %p301 = por %p299, %p300
    %p302 = scmp.ne.s32.totalorder %s290, %s291
    %p303 = scmp.eq.s32.totalorder %s29, 1
    %p304 = por %p302, %p303
    %p306 = scmp.ne.s32.totalorder %s291, %s305
    %p307 = scmp.eq.s32.totalorder %s29, 0
    %p308 = por %p306, %p307
    %s310 = sadd.s32 %s309, 1
    %p313 = scmp.eq.s32.totalorder %s23, 1
    %p314 = scmp.ne.s32.totalorder %s309, %s311
    %p315 = scmp.eq.s32.totalorder %s23, 0
    %p316 = por %p314, %p315
    %p317 = scmp.ne.s32.totalorder %s309, %s311
    %p318 = scmp.eq.s32.totalorder %s28, 1
    %p319 = por %p317, %p318
    %p320 = scmp.ne.s32.totalorder %s311, %s312
    %p321 = scmp.eq.s32.totalorder %s28, 0
    %p322 = por %p320, %p321
    %p323 = scmp.ne.s32.totalorder %s311, %s312
    %p324 = scmp.eq.s32.totalorder %s29, 1
    %p325 = por %p323, %p324
    %p327 = scmp.ne.s32.totalorder %s312, %s326
    %p328 = scmp.eq.s32.totalorder %s29, 0
    %p329 = por %p327, %p328
    %s331 = sadd.s32 %s330, 1
    %p334 = scmp.eq.s32.totalorder %s23, 1
    %p335 = scmp.ne.s32.totalorder %s330, %s332
    %p336 = scmp.eq.s32.totalorder %s23, 0
    %p337 = por %p335, %p336
    %p338 = scmp.ne.s32.totalorder %s330, %s332
    %p339 = scmp.eq.s32.totalorder %s28, 1
    %p340 = por %p338, %p339
    %p341 = scmp.ne.s32.totalorder %s332, %s333
    %p342 = scmp.eq.s32.totalorder %s28, 0
    %p343 = por %p341, %p342
    %p344 = scmp.ne.s32.totalorder %s332, %s333
    %p345 = scmp.eq.s32.totalorder %s29, 1
    %p346 = por %p344, %p345
    %p348 = scmp.ne.s32.totalorder %s333, %s347
    %p349 = scmp.eq.s32.totalorder %s29, 0
    %p350 = por %p348, %p349
    %s352 = sadd.s32 %s351, 1
    %p355 = scmp.eq.s32.totalorder %s23, 1
    %p356 = scmp.ne.s32.totalorder %s351, %s353
    %p357 = scmp.eq.s32.totalorder %s23, 0
    %p358 = por %p356, %p357
    %p359 = scmp.ne.s32.totalorder %s351, %s353
    %p360 = scmp.eq.s32.totalorder %s28, 1
    %p361 = por %p359, %p360
    %p362 = scmp.ne.s32.totalorder %s353, %s354
    %p363 = scmp.eq.s32.totalorder %s28, 0
    %p364 = por %p362, %p363
    %p365 = scmp.ne.s32.totalorder %s353, %s354
    %p366 = scmp.eq.s32.totalorder %s29, 1
    %p367 = por %p365, %p366
    %p369 = scmp.ne.s32.totalorder %s354, %s368
    %p370 = scmp.eq.s32.totalorder %s29, 0
    %p371 = por %p369, %p370
    %s373 = sadd.s32 %s372, 1
    %p376 = scmp.eq.s32.totalorder %s23, 1
    %p377 = scmp.ne.s32.totalorder %s372, %s374
    %p378 = scmp.eq.s32.totalorder %s23, 0
    %p379 = por %p377, %p378
    %p380 = scmp.ne.s32.totalorder %s372, %s374
    %p381 = scmp.eq.s32.totalorder %s28, 1
    %p382 = por %p380, %p381
    %p383 = scmp.ne.s32.totalorder %s374, %s375
    %p384 = scmp.eq.s32.totalorder %s28, 0
    %p385 = por %p383, %p384
    %p386 = scmp.ne.s32.totalorder %s374, %s375
    %p387 = scmp.eq.s32.totalorder %s29, 1
    %p388 = por %p386, %p387
    %p390 = scmp.ne.s32.totalorder %s375, %s389
    %p391 = scmp.eq.s32.totalorder %s29, 0
    %p392 = por %p390, %p391
    %s393 = ssub.s32 %s23, %s30
    %p394 = scmp.eq.s32.totalorder %s393, 0
    %s396 = sadd.s32 %s395, 1
    %s397 = scalar_select %p394, %s395, %s396
    %p400 = pneg %p394
    %p401 = scmp.eq.s32.totalorder %s23, 1
    %p402 = por %p400, %p401
    %p403 = scmp.ne.s32.totalorder %s395, %s398
    %p404 = scmp.eq.s32.totalorder %s23, 0
    %p405 = por %p403, %p404
    %p406 = scmp.ne.s32.totalorder %s395, %s398
    %p407 = scmp.eq.s32.totalorder %s28, 1
    %p408 = por %p406, %p407
    %p409 = scmp.ne.s32.totalorder %s398, %s399
    %p410 = scmp.eq.s32.totalorder %s28, 0
    %p411 = por %p409, %p410
    %p412 = scmp.ne.s32.totalorder %s398, %s399
    %p413 = scmp.eq.s32.totalorder %s29, 1
    %p414 = por %p412, %p413
    %p416 = scmp.ne.s32.totalorder %s399, %s415
    %p417 = scmp.eq.s32.totalorder %s29, 0
    %p418 = por %p416, %p417
    %p419 = scmp.le.s32.totalorder 1, %s23
    %p420 = scmp.lt.s32.totalorder %s23, 3
    %p421 = pnand %p419, %p420
    %p422 = pneg %p421
    // Predicated region
    $region9: #{_lambda_.5} parent=5 // pred_check
      _
    $region10: #{_lambda_.5} parent=5 // pred_check_branch
      %424 = sbr.rel (%p421) target = $region12
    $region11: #{_lambda_.5} parent=5 // pred_region
      %s425 = ssub.s32 %s23, 1
      // Predicated region
      $region13: #{_lambda_.5} parent=11 // pred_check
        %p426 = pneg %p70
      $region14: #{_lambda_.5} parent=11 // pred_check_branch
        %428 = sbr.rel (%p426) target = $region16
      $region15: #{_lambda_.5} parent=11 // pred_region
        _
      $region16: #{_lambda_.5} parent=11 // pred_fallthru
        _
      // Predicated region
      $region17: #{_lambda_.5} parent=11 // pred_check
        %p429 = pneg %p91
      $region18: #{_lambda_.5} parent=11 // pred_check_branch
        %431 = sbr.rel (%p429) target = $region20
      $region19: #{_lambda_.5} parent=11 // pred_region
        _
      $region20: #{_lambda_.5} parent=11 // pred_fallthru
        _
      // Predicated region
      $region21: #{_lambda_.5} parent=11 // pred_check
        %p432 = pneg %p112
      $region22: #{_lambda_.5} parent=11 // pred_check_branch
        %434 = sbr.rel (%p432) target = $region24
      $region23: #{_lambda_.5} parent=11 // pred_region
        _
      $region24: #{_lambda_.5} parent=11 // pred_fallthru
        _
      // Predicated region
      $region25: #{_lambda_.5} parent=11 // pred_check
        %p435 = pneg %p133
      $region26: #{_lambda_.5} parent=11 // pred_check_branch
        %437 = sbr.rel (%p435) target = $region28
      $region27: #{_lambda_.5} parent=11 // pred_region
        _
      $region28: #{_lambda_.5} parent=11 // pred_fallthru
        _
      // Predicated region
      $region29: #{_lambda_.5} parent=11 // pred_check
        %p438 = pneg %p154
      $region30: #{_lambda_.5} parent=11 // pred_check_branch
        %440 = sbr.rel (%p438) target = $region32
      $region31: #{_lambda_.5} parent=11 // pred_region
        _
      $region32: #{_lambda_.5} parent=11 // pred_fallthru
        _
      // Predicated region
      $region33: #{_lambda_.5} parent=11 // pred_check
        %p441 = pneg %p175
      $region34: #{_lambda_.5} parent=11 // pred_check_branch
        %443 = sbr.rel (%p441) target = $region36
      $region35: #{_lambda_.5} parent=11 // pred_region
        _
      $region36: #{_lambda_.5} parent=11 // pred_fallthru
        _
      // Predicated region
      $region37: #{_lambda_.5} parent=11 // pred_check
        %p444 = pneg %p196
      $region38: #{_lambda_.5} parent=11 // pred_check_branch
        %446 = sbr.rel (%p444) target = $region40
      $region39: #{_lambda_.5} parent=11 // pred_region
        _
      $region40: #{_lambda_.5} parent=11 // pred_fallthru
        _
      // Predicated region
      $region41: #{_lambda_.5} parent=11 // pred_check
        %p447 = pneg %p217
      $region42: #{_lambda_.5} parent=11 // pred_check_branch
        %449 = sbr.rel (%p447) target = $region44
      $region43: #{_lambda_.5} parent=11 // pred_region
        _
      $region44: #{_lambda_.5} parent=11 // pred_fallthru
        _
      // Predicated region
      $region45: #{_lambda_.5} parent=11 // pred_check
        %p450 = pneg %p238
      $region46: #{_lambda_.5} parent=11 // pred_check_branch
        %452 = sbr.rel (%p450) target = $region48
      $region47: #{_lambda_.5} parent=11 // pred_region
        _
      $region48: #{_lambda_.5} parent=11 // pred_fallthru
        _
      // Predicated region
      $region49: #{_lambda_.5} parent=11 // pred_check
        %p453 = pneg %p259
      $region50: #{_lambda_.5} parent=11 // pred_check_branch
        %455 = sbr.rel (%p453) target = $region52
      $region51: #{_lambda_.5} parent=11 // pred_region
        _
      $region52: #{_lambda_.5} parent=11 // pred_fallthru
        _
      // Predicated region
      $region53: #{_lambda_.5} parent=11 // pred_check
        %p456 = pneg %p280
      $region54: #{_lambda_.5} parent=11 // pred_check_branch
        %458 = sbr.rel (%p456) target = $region56
      $region55: #{_lambda_.5} parent=11 // pred_region
        _
      $region56: #{_lambda_.5} parent=11 // pred_fallthru
        _
      // Predicated region
      $region57: #{_lambda_.5} parent=11 // pred_check
        %p459 = pneg %p301
      $region58: #{_lambda_.5} parent=11 // pred_check_branch
        %461 = sbr.rel (%p459) target = $region60
      $region59: #{_lambda_.5} parent=11 // pred_region
        _
      $region60: #{_lambda_.5} parent=11 // pred_fallthru
        _
      // Predicated region
      $region61: #{_lambda_.5} parent=11 // pred_check
        %p462 = pneg %p322
      $region62: #{_lambda_.5} parent=11 // pred_check_branch
        %464 = sbr.rel (%p462) target = $region64
      $region63: #{_lambda_.5} parent=11 // pred_region
        _
      $region64: #{_lambda_.5} parent=11 // pred_fallthru
        _
      // Predicated region
      $region65: #{_lambda_.5} parent=11 // pred_check
        %p465 = pneg %p343
      $region66: #{_lambda_.5} parent=11 // pred_check_branch
        %467 = sbr.rel (%p465) target = $region68
      $region67: #{_lambda_.5} parent=11 // pred_region
        _
      $region68: #{_lambda_.5} parent=11 // pred_fallthru
        _
      // Predicated region
      $region69: #{_lambda_.5} parent=11 // pred_check
        %p468 = pneg %p364
      $region70: #{_lambda_.5} parent=11 // pred_check_branch
        %470 = sbr.rel (%p468) target = $region72
      $region71: #{_lambda_.5} parent=11 // pred_region
        _
      $region72: #{_lambda_.5} parent=11 // pred_fallthru
        _
      // Predicated region
      $region73: #{_lambda_.5} parent=11 // pred_check
        %p471 = pneg %p385
      $region74: #{_lambda_.5} parent=11 // pred_check_branch
        %473 = sbr.rel (%p471) target = $region76
      $region75: #{_lambda_.5} parent=11 // pred_region
        _
      $region76: #{_lambda_.5} parent=11 // pred_fallthru
        _
    $region12: #{_lambda_.5} parent=5 // pred_fallthru
      _
    %p474 = scmp.lt.s32.totalorder %s23, 2
    // Predicated region
    $region77: #{_lambda_.5} parent=5 // pred_check
      %p475 = pneg %p474
    $region78: #{_lambda_.5} parent=5 // pred_check_branch
      %477 = sbr.rel (%p475) target = $region80
    $region79: #{_lambda_.5} parent=5 // pred_region
      // Predicated region
      $region81: #{_lambda_.5} parent=79 // pred_check
        %p478 = pneg %p43
      $region82: #{_lambda_.5} parent=79 // pred_check_branch
        %480 = sbr.rel (%p478) target = $region84
      $region83: #{_lambda_.5} parent=79 // pred_region
        %p481 = scmp.lt.s32.totalorder %s23, 1
        %s482 = scalar_select %p481, %s23, 1
        %s483 = smul.addr %s482, 8
        %s484 = scalar_lea.vmem %s0, %s483
      $region84: #{_lambda_.5} parent=79 // pred_fallthru
        _
    $region80: #{_lambda_.5} parent=5 // pred_fallthru
      _
    %p485 = scmp.le.s32.totalorder 1, %s23
    %p486 = scmp.lt.s32.totalorder %s23, 3
    %p487 = pnand %p485, %p486
    %p488 = pneg %p487
    // Predicated region
    $region85: #{_lambda_.5} parent=5 // pred_check
      _
    $region86: #{_lambda_.5} parent=5 // pred_check_branch
      %490 = sbr.rel (%p487) target = $region88
    $region87: #{_lambda_.5} parent=5 // pred_region
      %s491 = ssub.s32 %s23, 1
      %p492 = scmp.lt.s32.totalorder %s28, 1
      %s493 = scalar_select %p492, %s28, 1
      %s494 = smul.addr %s493, 8
      %s495 = scalar_lea.vmem %s0, %s494
      %p496 = pneg %p49
      %p497 = pneg %p46
      %p498 = pneg %p70
      %p499 = pneg %p67
      %p500 = pneg %p91
      %p501 = pneg %p88
      %p502 = pneg %p112
      %p503 = pneg %p109
      %p504 = pneg %p133
      %p505 = pneg %p130
      %p506 = pneg %p154
      %p507 = pneg %p151
      %p508 = pneg %p175
      %p509 = pneg %p172
      %p510 = pneg %p196
      %p511 = pneg %p193
      %p512 = pneg %p217
      %p513 = pneg %p214
      %p514 = pneg %p238
      %p515 = pneg %p235
      %p516 = pneg %p259
      %p517 = pneg %p256
      %p518 = pneg %p280
      %p519 = pneg %p277
      %p520 = pneg %p301
      %p521 = pneg %p298
      %p522 = pneg %p322
      %p523 = pneg %p319
      %p524 = pneg %p343
      %p525 = pneg %p340
      %p526 = pneg %p364
      %p527 = pneg %p361
      %p528 = pneg %p385
      %p529 = pneg %p382
      %p530 = pneg %p411
      %p531 = pneg %p408
      %p532 = scmp.lt.s32.totalorder %s28, 1
      %s533 = scalar_select %p532, %s28, 1
      %s534 = smul.addr %s533, 8
      %s535 = scalar_lea.vmem %s17, %s534
      %p536 = scmp.lt.s32.totalorder %s28, 1
      %s537 = scalar_select %p536, %s28, 1
      %s538 = smul.addr %s537, 8
      %s539 = scalar_lea.vmem %s0, %s538
      %p540 = scmp.lt.s32.totalorder %s28, 1
      %s541 = scalar_select %p540, %s28, 1
      %s542 = smul.addr %s541, 8
      %s543 = scalar_lea.vmem %s17, %s542
      %v545 = vld [vmem:[%s539] sm:$0x1f]
      %v546 = vld [vmem:[%s1] sm:$0x1]
      %v547 = vld [vmem:[%s2] sm:$0x1]
      %vm548 = vcmask 258048
      %v549 = vsel %vm548, %v545, 0.0
      %550 = vadd.xlane.f32.xlu0 %v549
      %v551 = vpop.xlane.xlu0 %550
      %v552 = vrcp.pop 32.0
      %v553 = vmul.f32 %v551, %v552
      %v554 = vsub.f32 %v545, %v553
      %v555 = vmul.f32 %v554, %v554
      %v556 = vsel %vm548, %v555, 0.0
      %557 = vadd.xlane.f32.xlu0 %v556
      %v558 = vpop.xlane.xlu0 %557
      %v559 = vmul.f32 %v558, %v552
      %v560 = vadd.f32 %v559, 1e-06
      %v561 = vrsqrt.pop %v560
      %v562 = vmul.f32 %v554, %v561
      %v564 = vlaneseq
      %v565 = vshrl.u32 %v564, 7
      %v566 = vsub.s32 0, %v565
      %v567 = vrot.slane %v546, %v566
      %v569 = vmul.f32 %v562, %v567
      %v571 = vlaneseq
      %v572 = vshrl.u32 %v571, 7
      %v573 = vsub.s32 0, %v572
      %v574 = vrot.slane %v547, %v573
      %v576 = vadd.f32 %v569, %v574
      %v577 = vld [vmem:[%s3] sm:$0xff]
      %v578 = vld [vmem:[%s3 + $0x8] sm:$0xff]
      %v579 = vld [vmem:[%s3 + $0x10] sm:$0xff]
      %v580 = vld [vmem:[%s3 + $0x18] sm:$0xff]
      %v581 = vpack.c.bf16 %v576, %v576
      %v582 = vpack.c.bf16 %v578, %v577
      %v583 = vpack.c.bf16 %v580, %v579
      %v584 = vld [vmem:[%s4] sm:$0x1]
      %v586 = vlaneseq
      %v587 = vshrl.u32 %v586, 7
      %v588 = vsub.s32 0, %v587
      %v589 = vrot.slane %v584, %v588
      %vm591 = vcmask 261120
      %v593 = vsel %vm591, %v581, 0
      %595 = vmatprep.subr.bf16.mxu0 0
      %596 = vmatpush1.bf16.msra.mxu0 %v582
      %597 = vmatprep.subr.bf16.mxu0 0
      %598 = vmatpush1.bf16.msra.mxu0 %v583
      %599 = vmatprep.subr.bf16.mxu0 0
      %600 = vmatpush1.bf16.msra.mxu0 0
      %601 = vmatprep.subr.bf16.mxu0 0
      %602 = vmatpush1.bf16.msra.mxu0 0
      %603 = vmatprep.subr.bf16.mxu0 0
      %604 = vmatpush1.bf16.msra.mxu0 0
      %605 = vmatprep.subr.bf16.mxu0 0
      %606 = vmatpush1.bf16.msra.mxu0 0
      %607 = vmatprep.subr.bf16.mxu0 0
      %608 = vmatpush1.bf16.msra.mxu0 0
      %609 = vmatprep.subr.bf16.mxu0 0
      %610 = vmatpush1.bf16.msra.mxu0 0
      %611 = vmatprep.subr.bf16.mxu0 0
      %612 = vmatpush1.bf16.msra.mxu0 0
      %613 = vmatprep.subr.bf16.mxu0 0
      %614 = vmatpush1.bf16.msra.mxu0 0
      %615 = vmatprep.subr.bf16.mxu0 0
      %616 = vmatpush1.bf16.msra.mxu0 0
      %617 = vmatprep.subr.bf16.mxu0 0
      %618 = vmatpush1.bf16.msra.mxu0 0
      %619 = vmatprep.subr.bf16.mxu0 0
      %620 = vmatpush1.bf16.msra.mxu0 0
      %621 = vmatprep.subr.bf16.mxu0 0
      %622 = vmatpush1.bf16.msra.mxu0 0
      %623 = vmatprep.subr.bf16.mxu0 0
      %624 = vmatpush1.bf16.msra.mxu0 0
      %625 = vmatprep.subr.bf16.mxu0 0
      %626 = vmatpush1.bf16.msra.mxu0 0
      %627 = vmatprep.mubr.bf16.mxu0 0
      %628 = vmatmul.mubr.bf16.gmra.mrb[0].mxu0 %v593
      %v629 = vpop.f32.mrb[0].mxu0
      %v630 = vadd.f32 %v589, %v629
      %v631 = vpop.f32.mrb[0].mxu0
      %v632 = vpop.f32.mrb[0].mxu0
      %v633 = vpop.f32.mrb[0].mxu0
      %634 = vdwg.mxu0
      %v635 = vld [vmem:[%s5] sm:$0xff]
      %v636 = vld [vmem:[%s5 + $0x8] sm:$0xff]
      %v637 = vld [vmem:[%s5 + $0x10] sm:$0xff]
      %v638 = vld [vmem:[%s5 + $0x18] sm:$0xff]
      %v639 = vpack.c.bf16 %v636, %v635
      %v640 = vpack.c.bf16 %v638, %v637
      %v641 = vld [vmem:[%s6] sm:$0x1]
      %v643 = vlaneseq
      %v644 = vshrl.u32 %v643, 7
      %v645 = vsub.s32 0, %v644
      %v646 = vrot.slane %v641, %v645
      %648 = vmatprep.subr.bf16.mxu0 0
      %649 = vmatpush1.bf16.msra.mxu0 %v639
      %650 = vmatprep.subr.bf16.mxu0 0
      %651 = vmatpush1.bf16.msra.mxu0 %v640
      %652 = vmatprep.subr.bf16.mxu0 0
      %653 = vmatpush1.bf16.msra.mxu0 0
      %654 = vmatprep.subr.bf16.mxu0 0
      %655 = vmatpush1.bf16.msra.mxu0 0
      %656 = vmatprep.subr.bf16.mxu0 0
      %657 = vmatpush1.bf16.msra.mxu0 0
      %658 = vmatprep.subr.bf16.mxu0 0
      %659 = vmatpush1.bf16.msra.mxu0 0
      %660 = vmatprep.subr.bf16.mxu0 0
      %661 = vmatpush1.bf16.msra.mxu0 0
      %662 = vmatprep.subr.bf16.mxu0 0
      %663 = vmatpush1.bf16.msra.mxu0 0
      %664 = vmatprep.subr.bf16.mxu0 0
      %665 = vmatpush1.bf16.msra.mxu0 0
      %666 = vmatprep.subr.bf16.mxu0 0
      %667 = vmatpush1.bf16.msra.mxu0 0
      %668 = vmatprep.subr.bf16.mxu0 0
      %669 = vmatpush1.bf16.msra.mxu0 0
      %670 = vmatprep.subr.bf16.mxu0 0
      %671 = vmatpush1.bf16.msra.mxu0 0
      %672 = vmatprep.subr.bf16.mxu0 0
      %673 = vmatpush1.bf16.msra.mxu0 0
      %674 = vmatprep.subr.bf16.mxu0 0
      %675 = vmatpush1.bf16.msra.mxu0 0
      %676 = vmatprep.subr.bf16.mxu0 0
      %677 = vmatpush1.bf16.msra.mxu0 0
      %678 = vmatprep.subr.bf16.mxu0 0
      %679 = vmatpush1.bf16.msra.mxu0 0
      %680 = vmatprep.mubr.bf16.mxu0 0
      %681 = vmatmul.mubr.bf16.gmra.mrb[0].mxu0 %v593
      %v682 = vpop.f32.mrb[0].mxu0
      %v683 = vadd.f32 %v646, %v682
      %v684 = vpop.f32.mrb[0].mxu0
      %v685 = vpop.f32.mrb[0].mxu0
      %v686 = vpop.f32.mrb[0].mxu0
      %687 = vdwg.mxu0
      %v688 = vld [vmem:[%s7] sm:$0xff]
      %v689 = vld [vmem:[%s7 + $0x8] sm:$0xff]
      %v690 = vld [vmem:[%s7 + $0x10] sm:$0xff]
      %v691 = vld [vmem:[%s7 + $0x18] sm:$0xff]
      %v692 = vpack.c.bf16 %v689, %v688
      %v693 = vpack.c.bf16 %v691, %v690
      %v694 = vld [vmem:[%s8] sm:$0x1]
      %v696 = vlaneseq
      %v697 = vshrl.u32 %v696, 7
      %v698 = vsub.s32 0, %v697
      %v699 = vrot.slane %v694, %v698
      %701 = vmatprep.subr.bf16.mxu0 0
      %702 = vmatpush1.bf16.msra.mxu0 %v692
      %703 = vmatprep.subr.bf16.mxu0 0
      %704 = vmatpush1.bf16.msra.mxu0 %v693
      %705 = vmatprep.subr.bf16.mxu0 0
      %706 = vmatpush1.bf16.msra.mxu0 0
      %707 = vmatprep.subr.bf16.mxu0 0
      %708 = vmatpush1.bf16.msra.mxu0 0
      %709 = vmatprep.subr.bf16.mxu0 0
      %710 = vmatpush1.bf16.msra.mxu0 0
      %711 = vmatprep.subr.bf16.mxu0 0
      %712 = vmatpush1.bf16.msra.mxu0 0
      %713 = vmatprep.subr.bf16.mxu0 0
      %714 = vmatpush1.bf16.msra.mxu0 0
      %715 = vmatprep.subr.bf16.mxu0 0
      %716 = vmatpush1.bf16.msra.mxu0 0
      %717 = vmatprep.subr.bf16.mxu0 0
      %718 = vmatpush1.bf16.msra.mxu0 0
      %719 = vmatprep.subr.bf16.mxu0 0
      %720 = vmatpush1.bf16.msra.mxu0 0
      %721 = vmatprep.subr.bf16.mxu0 0
      %722 = vmatpush1.bf16.msra.mxu0 0
      %723 = vmatprep.subr.bf16.mxu0 0
      %724 = vmatpush1.bf16.msra.mxu0 0
      %725 = vmatprep.subr.bf16.mxu0 0
      %726 = vmatpush1.bf16.msra.mxu0 0
      %727 = vmatprep.subr.bf16.mxu0 0
      %728 = vmatpush1.bf16.msra.mxu0 0
      %729 = vmatprep.subr.bf16.mxu0 0
      %730 = vmatpush1.bf16.msra.mxu0 0
      %731 = vmatprep.subr.bf16.mxu0 0
      %732 = vmatpush1.bf16.msra.mxu0 0
      %733 = vmatprep.mubr.bf16.mxu0 0
      %734 = vmatmul.mubr.bf16.gmra.mrb[0].mxu0 %v593
      %v735 = vpop.f32.mrb[0].mxu0
      %v736 = vadd.f32 %v699, %v735
      %v737 = vpop.f32.mrb[0].mxu0
      %v738 = vpop.f32.mrb[0].mxu0
      %v739 = vpop.f32.mrb[0].mxu0
      %740 = vdwg.mxu0
      %v741 = vpack.c.bf16 %v630, %v630
      %v742 = vpack.c.bf16 %v683, %v683
      %vm743 = vcmask 130048
      %v745 = vsel %vm743, %v741, 0
      %v748 = vsel %vm743, %v742, 0
      %750 = vmatprep.subr.bf16.mxu0 0
      %751 = vmatpush1.bf16.xpose.msra.mxu0 %v748
      %752 = vmatprep.subr.bf16.mxu0 0
      %753 = vmatpush1.bf16.xpose.msra.mxu0 0
      %754 = vmatprep.subr.bf16.mxu0 0
      %755 = vmatpush1.bf16.xpose.msra.mxu0 0
      %756 = vmatprep.subr.bf16.mxu0 0
      %757 = vmatpush1.bf16.xpose.msra.mxu0 0
      %758 = vmatprep.subr.bf16.mxu0 0
      %759 = vmatpush1.bf16.xpose.msra.mxu0 0
      %760 = vmatprep.subr.bf16.mxu0 0
      %761 = vmatpush1.bf16.xpose.msra.mxu0 0
      %762 = vmatprep.subr.bf16.mxu0 0
      %763 = vmatpush1.bf16.xpose.msra.mxu0 0
      %764 = vmatprep.subr.bf16.mxu0 0
      %765 = vmatpush1.bf16.xpose.msra.mxu0 0
      %766 = vmatprep.subr.bf16.mxu0 0
      %767 = vmatpush1.bf16.xpose.msra.mxu0 0
      %768 = vmatprep.subr.bf16.mxu0 0
      %769 = vmatpush1.bf16.xpose.msra.mxu0 0
      %770 = vmatprep.subr.bf16.mxu0 0
      %771 = vmatpush1.bf16.xpose.msra.mxu0 0
      %772 = vmatprep.subr.bf16.mxu0 0
      %773 = vmatpush1.bf16.xpose.msra.mxu0 0
      %774 = vmatprep.subr.bf16.mxu0 0
      %775 = vmatpush1.bf16.xpose.msra.mxu0 0
      %776 = vmatprep.subr.bf16.mxu0 0
      %777 = vmatpush1.bf16.xpose.msra.mxu0 0
      %778 = vmatprep.subr.bf16.mxu0 0
      %779 = vmatpush1.bf16.xpose.msra.mxu0 0
      %780 = vmatprep.subr.bf16.mxu0 0
      %781 = vmatpush1.bf16.xpose.msra.mxu0 0
      %782 = vmatprep.mubr.bf16.mxu0 0
      %783 = vmatmul.mubr.bf16.gmra.mrb[0].mxu0 %v745
      %v784 = vpop.f32.mrb[0].mxu0
      %v785 = vadd.f32 0.0, %v784
      %v786 = vpop.f32.mrb[0].mxu0
      %v787 = vpop.f32.mrb[0].mxu0
      %v788 = vpop.f32.mrb[0].mxu0
      %789 = vdwg.mxu0
      %v790 = vmul.f32 %v785, 0.25
      %vm791 = vcmask 36864
      %v792 = vsel %vm791, %v790, -inf
      %793 = vmax.xlane.f32.xlu0 %v792
      %v794 = vpop.xlane.xlu0 %793
      %v795 = vsub.f32 %v790, %v794
      %v796 = vmul.f32 %v795, 1.442695
      %v797 = vpow.pop %v796
      %v798 = vsel %vm791, %v797, 0.0
      %799 = vadd.xlane.f32.xlu0 %v798
      %v800 = vpop.xlane.xlu0 %799
      %v801 = vrcp.pop %v800
      %v802 = vmul.f32 %v797, %v801
      %v803 = vpack.c.bf16 %v802, %v802
      %v804 = vpack.c.bf16 %v736, %v736
      %vm805 = vcmask 39936
      %v807 = vsel %vm805, %v803, 0
      %vm809 = vcmask 1041408
      %vm810 = vcmask 1042432
      %v811 = vsel %vm809, 4294967295, 65535
      %v812 = vsel %vm810, %v811, 0
      %v814 = vand.u32 %v804, %v812
      %816 = vmatprep.subr.bf16.mxu0 0
      %817 = vmatpush1.bf16.msra.mxu0 %v814
      %818 = vmatprep.subr.bf16.mxu0 0
      %819 = vmatpush1.bf16.msra.mxu0 0
      %820 = vmatprep.subr.bf16.mxu0 0
      %821 = vmatpush1.bf16.msra.mxu0 0
      %822 = vmatprep.subr.bf16.mxu0 0
      %823 = vmatpush1.bf16.msra.mxu0 0
      %824 = vmatprep.subr.bf16.mxu0 0
      %825 = vmatpush1.bf16.msra.mxu0 0
      %826 = vmatprep.subr.bf16.mxu0 0
      %827 = vmatpush1.bf16.msra.mxu0 0
      %828 = vmatprep.subr.bf16.mxu0 0
      %829 = vmatpush1.bf16.msra.mxu0 0
      %830 = vmatprep.subr.bf16.mxu0 0
      %831 = vmatpush1.bf16.msra.mxu0 0
      %832 = vmatprep.subr.bf16.mxu0 0
      %833 = vmatpush1.bf16.msra.mxu0 0
      %834 = vmatprep.subr.bf16.mxu0 0
      %835 = vmatpush1.bf16.msra.mxu0 0
      %836 = vmatprep.subr.bf16.mxu0 0
      %837 = vmatpush1.bf16.msra.mxu0 0
      %838 = vmatprep.subr.bf16.mxu0 0
      %839 = vmatpush1.bf16.msra.mxu0 0
      %840 = vmatprep.subr.bf16.mxu0 0
      %841 = vmatpush1.bf16.msra.mxu0 0
      %842 = vmatprep.subr.bf16.mxu0 0
      %843 = vmatpush1.bf16.msra.mxu0 0
      %844 = vmatprep.subr.bf16.mxu0 0
      %845 = vmatpush1.bf16.msra.mxu0 0
      %846 = vmatprep.subr.bf16.mxu0 0
      %847 = vmatpush1.bf16.msra.mxu0 0
      %848 = vmatprep.mubr.bf16.mxu0 0
      %849 = vmatmul.mubr.bf16.gmra.mrb[0].mxu0 %v807
      %v850 = vpop.f32.mrb[0].mxu0
      %v851 = vadd.f32 0.0, %v850
      %v852 = vpop.f32.mrb[0].mxu0
      %v853 = vpop.f32.mrb[0].mxu0
      %v854 = vpop.f32.mrb[0].mxu0
      %855 = vdwg.mxu0
      %v856 = vld [vmem:[%s9] sm:$0xff]
      %v857 = vld [vmem:[%s9 + $0x8] sm:$0xff]
      %v858 = vpack.c.bf16 %v851, %v851
      %v859 = vpack.c.bf16 %v857, %v856
      %s860 = scalar_lea.vmem %s3, 32
      %v861 = vld [vmem:[%s860] sm:$0xff]
      %v862 = vld [vmem:[%s860 + $0x8] sm:$0xff]
      %v863 = vld [vmem:[%s860 + $0x10] sm:$0xff]
      %v864 = vld [vmem:[%s860 + $0x18] sm:$0xff]
      %v865 = vpack.c.bf16 %v862, %v861
      %v866 = vpack.c.bf16 %v864, %v863
      %s867 = scalar_lea.vmem %s4, 1
      %v868 = vld [vmem:[%s867] sm:$0x1]
      %v870 = vlaneseq
      %v871 = vshrl.u32 %v870, 7
      %v872 = vsub.s32 0, %v871
      %v873 = vrot.slane %v868, %v872
      %875 = vmatprep.subr.bf16.mxu0 0
      %876 = vmatpush1.bf16.msra.mxu0 %v865
      %877 = vmatprep.subr.bf16.mxu0 0
      %878 = vmatpush1.bf16.msra.mxu0 %v866
      %879 = vmatprep.subr.bf16.mxu0 0
      %880 = vmatpush1.bf16.msra.mxu0 0
      %881 = vmatprep.subr.bf16.mxu0 0
      %882 = vmatpush1.bf16.msra.mxu0 0
      %883 = vmatprep.subr.bf16.mxu0 0
      %884 = vmatpush1.bf16.msra.mxu0 0
      %885 = vmatprep.subr.bf16.mxu0 0
      %886 = vmatpush1.bf16.msra.mxu0 0
      %887 = vmatprep.subr.bf16.mxu0 0
      %888 = vmatpush1.bf16.msra.mxu0 0
      %889 = vmatprep.subr.bf16.mxu0 0
      %890 = vmatpush1.bf16.msra.mxu0 0
      %891 = vmatprep.subr.bf16.mxu0 0
      %892 = vmatpush1.bf16.msra.mxu0 0
      %893 = vmatprep.subr.bf16.mxu0 0
      %894 = vmatpush1.bf16.msra.mxu0 0
      %895 = vmatprep.subr.bf16.mxu0 0
      %896 = vmatpush1.bf16.msra.mxu0 0
      %897 = vmatprep.subr.bf16.mxu0 0
      %898 = vmatpush1.bf16.msra.mxu0 0
      %899 = vmatprep.subr.bf16.mxu0 0
      %900 = vmatpush1.bf16.msra.mxu0 0
      %901 = vmatprep.subr.bf16.mxu0 0
      %902 = vmatpush1.bf16.msra.mxu0 0
      %903 = vmatprep.subr.bf16.mxu0 0
      %904 = vmatpush1.bf16.msra.mxu0 0
      %905 = vmatprep.subr.bf16.mxu0 0
      %906 = vmatpush1.bf16.msra.mxu0 0
      %907 = vmatprep.mubr.bf16.mxu0 0
      %908 = vmatmul.mubr.bf16.gmra.mrb[0].mxu0 %v593
      %v909 = vpop.f32.mrb[0].mxu0
      %v910 = vadd.f32 %v873, %v909
      %v911 = vpop.f32.mrb[0].mxu0
      %v912 = vpop.f32.mrb[0].mxu0
      %v913 = vpop.f32.mrb[0].mxu0
      %914 = vdwg.mxu0
      %s915 = scalar_lea.vmem %s5, 32
      %v916 = vld [vmem:[%s915] sm:$0xff]
      %v917 = vld [vmem:[%s915 + $0x8] sm:$0xff]
      %v918 = vld [vmem:[%s915 + $0x10] sm:$0xff]
      %v919 = vld [vmem:[%s915 + $0x18] sm:$0xff]
      %v920 = vpack.c.bf16 %v917, %v916
      %v921 = vpack.c.bf16 %v919, %v918
      %s922 = scalar_lea.vmem %s6, 1
      %v923 = vld [vmem:[%s922] sm:$0x1]
      %v925 = vlaneseq
      %v926 = vshrl.u32 %v925, 7
      %v927 = vsub.s32 0, %v926
      %v928 = vrot.slane %v923, %v927
      %930 = vmatprep.subr.bf16.mxu0 0
      %931 = vmatpush1.bf16.msra.mxu0 %v920
      %932 = vmatprep.subr.bf16.mxu0 0
      %933 = vmatpush1.bf16.msra.mxu0 %v921
      %934 = vmatprep.subr.bf16.mxu0 0
      %935 = vmatpush1.bf16.msra.mxu0 0
      %936 = vmatprep.subr.bf16.mxu0 0
      %937 = vmatpush1.bf16.msra.mxu0 0
      %938 = vmatprep.subr.bf16.mxu0 0
      %939 = vmatpush1.bf16.msra.mxu0 0
      %940 = vmatprep.subr.bf16.mxu0 0
      %941 = vmatpush1.bf16.msra.mxu0 0
      %942 = vmatprep.subr.bf16.mxu0 0
      %943 = vmatpush1.bf16.msra.mxu0 0
      %944 = vmatprep.subr.bf16.mxu0 0
      %945 = vmatpush1.bf16.msra.mxu0 0
      %946 = vmatprep.subr.bf16.mxu0 0
      %947 = vmatpush1.bf16.msra.mxu0 0
      %948 = vmatprep.subr.bf16.mxu0 0
      %949 = vmatpush1.bf16.msra.mxu0 0
      %950 = vmatprep.subr.bf16.mxu0 0
      %951 = vmatpush1.bf16.msra.mxu0 0
      %952 = vmatprep.subr.bf16.mxu0 0
      %953 = vmatpush1.bf16.msra.mxu0 0
      %954 = vmatprep.subr.bf16.mxu0 0
      %955 = vmatpush1.bf16.msra.mxu0 0
      %956 = vmatprep.subr.bf16.mxu0 0
      %957 = vmatpush1.bf16.msra.mxu0 0
      %958 = vmatprep.subr.bf16.mxu0 0
      %959 = vmatpush1.bf16.msra.mxu0 0
      %960 = vmatprep.subr.bf16.mxu0 0
      %961 = vmatpush1.bf16.msra.mxu0 0
      %962 = vmatprep.mubr.bf16.mxu0 0
      %963 = vmatmul.mubr.bf16.gmra.mrb[0].mxu0 %v593
      %v964 = vpop.f32.mrb[0].mxu0
      %v965 = vadd.f32 %v928, %v964
      %v966 = vpop.f32.mrb[0].mxu0
      %v967 = vpop.f32.mrb[0].mxu0
      %v968 = vpop.f32.mrb[0].mxu0
      %969 = vdwg.mxu0
      %s970 = scalar_lea.vmem %s7, 32
      %v971 = vld [vmem:[%s970] sm:$0xff]
      %v972 = vld [vmem:[%s970 + $0x8] sm:$0xff]
      %v973 = vld [vmem:[%s970 + $0x10] sm:$0xff]
      %v974 = vld [vmem:[%s970 + $0x18] sm:$0xff]
      %v975 = vpack.c.bf16 %v972, %v971
      %v976 = vpack.c.bf16 %v974, %v973
      %s977 = scalar_lea.vmem %s8, 1
      %v978 = vld [vmem:[%s977] sm:$0x1]
      %v980 = vlaneseq
      %v981 = vshrl.u32 %v980, 7
      %v982 = vsub.s32 0, %v981
      %v983 = vrot.slane %v978, %v982
      %985 = vmatprep.subr.bf16.mxu0 0
      %986 = vmatpush1.bf16.msra.mxu0 %v975
      %987 = vmatprep.subr.bf16.mxu0 0
      %988 = vmatpush1.bf16.msra.mxu0 %v976
      %989 = vmatprep.subr.bf16.mxu0 0
      %990 = vmatpush1.bf16.msra.mxu0 0
      %991 = vmatprep.subr.bf16.mxu0 0
      %992 = vmatpush1.bf16.msra.mxu0 0
      %993 = vmatprep.subr.bf16.mxu0 0
      %994 = vmatpush1.bf16.msra.mxu0 0
      %995 = vmatprep.subr.bf16.mxu0 0
      %996 = vmatpush1.bf16.msra.mxu0 0
      %997 = vmatprep.subr.bf16.mxu0 0
      %998 = vmatpush1.bf16.msra.mxu0 0
      %999 = vmatprep.subr.bf16.mxu0 0
      %1000 = vmatpush1.bf16.msra.mxu0 0
      %1001 = vmatprep.subr.bf16.mxu0 0
      %1002 = vmatpush1.bf16.msra.mxu0 0
      %1003 = vmatprep.subr.bf16.mxu0 0
      %1004 = vmatpush1.bf16.msra.mxu0 0
      %1005 = vmatprep.subr.bf16.mxu0 0
      %1006 = vmatpush1.bf16.msra.mxu0 0
      %1007 = vmatprep.subr.bf16.mxu0 0
      %1008 = vmatpush1.bf16.msra.mxu0 0
      %1009 = vmatprep.subr.bf16.mxu0 0
      %1010 = vmatpush1.bf16.msra.mxu0 0
      %1011 = vmatprep.subr.bf16.mxu0 0
      %1012 = vmatpush1.bf16.msra.mxu0 0
      %1013 = vmatprep.subr.bf16.mxu0 0
      %1014 = vmatpush1.bf16.msra.mxu0 0
      %1015 = vmatprep.subr.bf16.mxu0 0
      %1016 = vmatpush1.bf16.msra.mxu0 0
      %1017 = vmatprep.mubr.bf16.mxu0 0
      %1018 = vmatmul.mubr.bf16.gmra.mrb[0].mxu0 %v593
      %v1019 = vpop.f32.mrb[0].mxu0
      %v1020 = vadd.f32 %v983, %v1019
      %v1021 = vpop.f32.mrb[0].mxu0
      %v1022 = vpop.f32.mrb[0].mxu0
      %v1023 = vpop.f32.mrb[0].mxu0
      %1024 = vdwg.mxu0
      %v1025 = vpack.c.bf16 %v910, %v910
      %v1026 = vpack.c.bf16 %v965, %v965
      %v1028 = vsel %vm743, %v1025, 0
      %v1031 = vsel %vm743, %v1026, 0
      %1033 = vmatprep.subr.bf16.mxu0 0
      %1034 = vmatpush1.bf16.xpose.msra.mxu0 %v1031
      %1035 = vmatprep.subr.bf16.mxu0 0
      %1036 = vmatpush1.bf16.xpose.msra.mxu0 0
      %1037 = vmatprep.subr.bf16.mxu0 0
      %1038 = vmatpush1.bf16.xpose.msra.mxu0 0
      %1039 = vmatprep.subr.bf16.mxu0 0
      %1040 = vmatpush1.bf16.xpose.msra.mxu0 0
      %1041 = vmatprep.subr.bf16.mxu0 0
      %1042 = vmatpush1.bf16.xpose.msra.mxu0 0
      %1043 = vmatprep.subr.bf16.mxu0 0
      %1044 = vmatpush1.bf16.xpose.msra.mxu0 0
      %1045 = vmatprep.subr.bf16.mxu0 0
      %1046 = vmatpush1.bf16.xpose.msra.mxu0 0
      %1047 = vmatprep.subr.bf16.mxu0 0
      %1048 = vmatpush1.bf16.xpose.msra.mxu0 0
      %1049 = vmatprep.subr.bf16.mxu0 0
      %1050 = vmatpush1.bf16.xpose.msra.mxu0 0
      %1051 = vmatprep.subr.bf16.mxu0 0
      %1052 = vmatpush1.bf16.xpose.msra.mxu0 0
      %1053 = vmatprep.subr.bf16.mxu0 0
      %1054 = vmatpush1.bf16.xpose.msra.mxu0 0
      %1055 = vmatprep.subr.bf16.mxu0 0
      %1056 = vmatpush1.bf16.xpose.msra.mxu0 0
      %1057 = vmatprep.subr.bf16.mxu0 0
      %1058 = vmatpush1.bf16.xpose.msra.mxu0 0
      %1059 = vmatprep.subr.bf16.mxu0 0
      %1060 = vmatpush1.bf16.xpose.msra.mxu0 0
      %1061 = vmatprep.subr.bf16.mxu0 0
      %1062 = vmatpush1.bf16.xpose.msra.mxu0 0
      %1063 = vmatprep.subr.bf16.mxu0 0
      %1064 = vmatpush1.bf16.xpose.msra.mxu0 0
      %1065 = vmatprep.mubr.bf16.mxu0 0
      %1066 = vmatmul.mubr.bf16.gmra.mrb[0].mxu0 %v1028
      %v1067 = vpop.f32.mrb[0].mxu0
      %v1068 = vadd.f32 0.0, %v1067
      %v1069 = vpop.f32.mrb[0].mxu0
      %v1070 = vpop.f32.mrb[0].mxu0
      %v1071 = vpop.f32.mrb[0].mxu0
      %1072 = vdwg.mxu0
      %v1073 = vmul.f32 %v1068, 0.25
      %v1074 = vsel %vm791, %v1073, -inf
      %1075 = vmax.xlane.f32.xlu0 %v1074
      %v1076 = vpop.xlane.xlu0 %1075
      %v1077 = vsub.f32 %v1073, %v1076
      %v1078 = vmul.f32 %v1077, 1.442695
      %v1079 = vpow.pop %v1078
      %v1080 = vsel %vm791, %v1079, 0.0
      %1081 = vadd.xlane.f32.xlu0 %v1080
      %v1082 = vpop.xlane.xlu0 %1081
      %v1083 = vrcp.pop %v1082
      %v1084 = vmul.f32 %v1079, %v1083
      %v1085 = vpack.c.bf16 %v1084, %v1084
      %v1086 = vpack.c.bf16 %v1020, %v1020
      %v1088 = vsel %vm805, %v1085, 0
      %v1091 = vand.u32 %v1086, %v812
      %1093 = vmatprep.subr.bf16.mxu0 0
      %1094 = vmatpush1.bf16.msra.mxu0 %v1091
      %1095 = vmatprep.subr.bf16.mxu0 0
      %1096 = vmatpush1.bf16.msra.mxu0 0
      %1097 = vmatprep.subr.bf16.mxu0 0
      %1098 = vmatpush1.bf16.msra.mxu0 0
      %1099 = vmatprep.subr.bf16.mxu0 0
      %1100 = vmatpush1.bf16.msra.mxu0 0
      %1101 = vmatprep.subr.bf16.mxu0 0
      %1102 = vmatpush1.bf16.msra.mxu0 0
      %1103 = vmatprep.subr.bf16.mxu0 0
      %1104 = vmatpush1.bf16.msra.mxu0 0
      %1105 = vmatprep.subr.bf16.mxu0 0
      %1106 = vmatpush1.bf16.msra.mxu0 0
      %1107 = vmatprep.subr.bf16.mxu0 0
      %1108 = vmatpush1.bf16.msra.mxu0 0
      %1109 = vmatprep.subr.bf16.mxu0 0
      %1110 = vmatpush1.bf16.msra.mxu0 0
      %1111 = vmatprep.subr.bf16.mxu0 0
      %1112 = vmatpush1.bf16.msra.mxu0 0
      %1113 = vmatprep.subr.bf16.mxu0 0
      %1114 = vmatpush1.bf16.msra.mxu0 0
      %1115 = vmatprep.subr.bf16.mxu0 0
      %1116 = vmatpush1.bf16.msra.mxu0 0
      %1117 = vmatprep.subr.bf16.mxu0 0
      %1118 = vmatpush1.bf16.msra.mxu0 0
      %1119 = vmatprep.subr.bf16.mxu0 0
      %1120 = vmatpush1.bf16.msra.mxu0 0
      %1121 = vmatprep.subr.bf16.mxu0 0
      %1122 = vmatpush1.bf16.msra.mxu0 0
      %1123 = vmatprep.subr.bf16.mxu0 0
      %1124 = vmatpush1.bf16.msra.mxu0 0
      %1125 = vmatprep.mubr.bf16.mxu0 0
      %1126 = vmatmul.mubr.bf16.gmra.mrb[0].mxu0 %v1088
      %v1127 = vpop.f32.mrb[0].mxu0
      %v1128 = vadd.f32 0.0, %v1127
      %v1129 = vpop.f32.mrb[0].mxu0
      %v1130 = vpop.f32.mrb[0].mxu0
      %v1131 = vpop.f32.mrb[0].mxu0
      %1132 = vdwg.mxu0
      %s1133 = scalar_lea.vmem %s9, 16
      %v1134 = vld [vmem:[%s1133] sm:$0xff]
      %v1135 = vld [vmem:[%s1133 + $0x8] sm:$0xff]
      %v1136 = vpack.c.bf16 %v1128, %v1128
      %v1137 = vpack.c.bf16 %v1135, %v1134
      %v1139 = vsel %vm743, %v1136, 0
      %1141 = vmatprep.subr.bf16.mxu0 0
      %1142 = vmatpush1.bf16.msra.mxu0 %v1137
      %1143 = vmatprep.subr.bf16.mxu0 0
      %1144 = vmatpush1.bf16.msra.mxu0 0
      %1145 = vmatprep.subr.bf16.mxu0 0
      %1146 = vmatpush1.bf16.msra.mxu0 0
      %1147 = vmatprep.subr.bf16.mxu0 0
      %1148 = vmatpush1.bf16.msra.mxu0 0
      %1149 = vmatprep.subr.bf16.mxu0 0
      %1150 = vmatpush1.bf16.msra.mxu0 0
      %1151 = vmatprep.subr.bf16.mxu0 0
      %1152 = vmatpush1.bf16.msra.mxu0 0
      %1153 = vmatprep.subr.bf16.mxu0 0
      %1154 = vmatpush1.bf16.msra.mxu0 0
      %1155 = vmatprep.subr.bf16.mxu0 0
      %1156 = vmatpush1.bf16.msra.mxu0 0
      %1157 = vmatprep.subr.bf16.mxu0 0
      %1158 = vmatpush1.bf16.msra.mxu0 0
      %1159 = vmatprep.subr.bf16.mxu0 0
      %1160 = vmatpush1.bf16.msra.mxu0 0
      %1161 = vmatprep.subr.bf16.mxu0 0
      %1162 = vmatpush1.bf16.msra.mxu0 0
      %1163 = vmatprep.subr.bf16.mxu0 0
      %1164 = vmatpush1.bf16.msra.mxu0 0
      %1165 = vmatprep.subr.bf16.mxu0 0
      %1166 = vmatpush1.bf16.msra.mxu0 0
      %1167 = vmatprep.subr.bf16.mxu0 0
      %1168 = vmatpush1.bf16.msra.mxu0 0
      %1169 = vmatprep.subr.bf16.mxu0 0
      %1170 = vmatpush1.bf16.msra.mxu0 0
      %1171 = vmatprep.subr.bf16.mxu0 0
      %1172 = vmatpush1.bf16.msra.mxu0 0
      %1173 = vmatprep.mubr.bf16.mxu0 0
      %1174 = vmatmul.mubr.bf16.gmra.mrb[0].mxu0 %v1139
      %v1175 = vpop.f32.mrb[0].mxu0
      %v1176 = vadd.f32 0.0, %v1175
      %v1177 = vpop.f32.mrb[0].mxu0
      %v1178 = vpop.f32.mrb[0].mxu0
      %v1179 = vpop.f32.mrb[0].mxu0
      %1180 = vdwg.mxu0
      %v1182 = vsel %vm743, %v858, 0
      %1184 = vmatprep.subr.bf16.mxu0 0
      %1185 = vmatpush1.bf16.msra.mxu0 %v859
      %1186 = vmatprep.subr.bf16.mxu0 0
      %1187 = vmatpush1.bf16.msra.mxu0 0
      %1188 = vmatprep.subr.bf16.mxu0 0
      %1189 = vmatpush1.bf16.msra.mxu0 0
      %1190 = vmatprep.subr.bf16.mxu0 0
      %1191 = vmatpush1.bf16.msra.mxu0 0
      %1192 = vmatprep.subr.bf16.mxu0 0
      %1193 = vmatpush1.bf16.msra.mxu0 0
      %1194 = vmatprep.subr.bf16.mxu0 0
      %1195 = vmatpush1.bf16.msra.mxu0 0
      %1196 = vmatprep.subr.bf16.mxu0 0
      %1197 = vmatpush1.bf16.msra.mxu0 0
      %1198 = vmatprep.subr.bf16.mxu0 0
      %1199 = vmatpush1.bf16.msra.mxu0 0
      %1200 = vmatprep.subr.bf16.mxu0 0
      %1201 = vmatpush1.bf16.msra.mxu0 0
      %1202 = vmatprep.subr.bf16.mxu0 0
      %1203 = vmatpush1.bf16.msra.mxu0 0
      %1204 = vmatprep.subr.bf16.mxu0 0
      %1205 = vmatpush1.bf16.msra.mxu0 0
      %1206 = vmatprep.subr.bf16.mxu0 0
      %1207 = vmatpush1.bf16.msra.mxu0 0
      %1208 = vmatprep.subr.bf16.mxu0 0
      %1209 = vmatpush1.bf16.msra.mxu0 0
      %1210 = vmatprep.subr.bf16.mxu0 0
      %1211 = vmatpush1.bf16.msra.mxu0 0
      %1212 = vmatprep.subr.bf16.mxu0 0
      %1213 = vmatpush1.bf16.msra.mxu0 0
      %1214 = vmatprep.subr.bf16.mxu0 0
      %1215 = vmatpush1.bf16.msra.mxu0 0
      %1216 = vmatprep.mubr.bf16.mxu0 0
      %1217 = vmatmul.mubr.bf16.gmra.mrb[0].mxu0 %v1182
      %v1218 = vpop.f32.mrb[0].mxu0
      %v1219 = vadd.f32 %v1176, %v1218
      %v1220 = vpop.f32.mrb[0].mxu0
      %v1221 = vpop.f32.mrb[0].mxu0
      %v1222 = vpop.f32.mrb[0].mxu0
      %1223 = vdwg.mxu0
      %v1224 = vadd.f32 %v545, %v1219
      %v1225 = vld [vmem:[%s10] sm:$0x1]
      %v1227 = vlaneseq
      %v1228 = vshrl.u32 %v1227, 7
      %v1229 = vsub.s32 0, %v1228
      %v1230 = vrot.slane %v1225, %v1229
      %v1232 = vadd.f32 %v1224, %v1230
      %v1233 = vld [vmem:[%s11] sm:$0x1]
      %v1234 = vld [vmem:[%s12] sm:$0x1]
      %v1235 = vsel %vm548, %v1232, 0.0
      %1236 = vadd.xlane.f32.xlu0 %v1235
      %v1237 = vpop.xlane.xlu0 %1236
      %v1238 = vmul.f32 %v1237, %v552
      %v1239 = vsub.f32 %v1232, %v1238
      %v1240 = vmul.f32 %v1239, %v1239
      %v1241 = vsel %vm548, %v1240, 0.0
      %1242 = vadd.xlane.f32.xlu0 %v1241
      %v1243 = vpop.xlane.xlu0 %1242
      %v1244 = vmul.f32 %v1243, %v552
      %v1245 = vadd.f32 %v1244, 1e-06
      %v1246 = vrsqrt.pop %v1245
      %v1247 = vmul.f32 %v1239, %v1246
      %v1249 = vlaneseq
      %v1250 = vshrl.u32 %v1249, 7
      %v1251 = vsub.s32 0, %v1250
      %v1252 = vrot.slane %v1233, %v1251
      %v1254 = vmul.f32 %v1247, %v1252
      %v1256 = vlaneseq
      %v1257 = vshrl.u32 %v1256, 7
      %v1258 = vsub.s32 0, %v1257
      %v1259 = vrot.slane %v1234, %v1258
      %v1261 = vadd.f32 %v1254, %v1259
      %v1262 = vld [vmem:[%s13] sm:$0xff]
      %v1263 = vld [vmem:[%s13 + $0x8] sm:$0xff]
      %v1264 = vld [vmem:[%s13 + $0x10] sm:$0xff]
      %v1265 = vld [vmem:[%s13 + $0x18] sm:$0xff]
      %v1266 = vpack.c.bf16 %v1261, %v1261
      %v1267 = vpack.c.bf16 %v1263, %v1262
      %v1268 = vpack.c.bf16 %v1265, %v1264
      %v1269 = vld [vmem:[%s14] sm:$0x1]
      %v1271 = vlaneseq
      %v1272 = vshrl.u32 %v1271, 7
      %v1273 = vsub.s32 0, %v1272
      %v1274 = vrot.slane %v1269, %v1273
      %v1277 = vsel %vm591, %v1266, 0
      %1279 = vmatprep.subr.bf16.mxu0 0
      %1280 = vmatpush1.bf16.msra.mxu0 %v1267
      %1281 = vmatprep.subr.bf16.mxu0 0
      %1282 = vmatpush1.bf16.msra.mxu0 %v1268
      %1283 = vmatprep.subr.bf16.mxu0 0
      %1284 = vmatpush1.bf16.msra.mxu0 0
      %1285 = vmatprep.subr.bf16.mxu0 0
      %1286 = vmatpush1.bf16.msra.mxu0 0
      %1287 = vmatprep.subr.bf16.mxu0 0
      %1288 = vmatpush1.bf16.msra.mxu0 0
      %1289 = vmatprep.subr.bf16.mxu0 0
      %1290 = vmatpush1.bf16.msra.mxu0 0
      %1291 = vmatprep.subr.bf16.mxu0 0
      %1292 = vmatpush1.bf16.msra.mxu0 0
      %1293 = vmatprep.subr.bf16.mxu0 0
      %1294 = vmatpush1.bf16.msra.mxu0 0
      %1295 = vmatprep.subr.bf16.mxu0 0
      %1296 = vmatpush1.bf16.msra.mxu0 0
      %1297 = vmatprep.subr.bf16.mxu0 0
      %1298 = vmatpush1.bf16.msra.mxu0 0
      %1299 = vmatprep.subr.bf16.mxu0 0
      %1300 = vmatpush1.bf16.msra.mxu0 0
      %1301 = vmatprep.subr.bf16.mxu0 0
      %1302 = vmatpush1.bf16.msra.mxu0 0
      %1303 = vmatprep.subr.bf16.mxu0 0
      %1304 = vmatpush1.bf16.msra.mxu0 0
      %1305 = vmatprep.subr.bf16.mxu0 0
      %1306 = vmatpush1.bf16.msra.mxu0 0
      %1307 = vmatprep.subr.bf16.mxu0 0
      %1308 = vmatpush1.bf16.msra.mxu0 0
      %1309 = vmatprep.subr.bf16.mxu0 0
      %1310 = vmatpush1.bf16.msra.mxu0 0
      %1311 = vmatprep.mubr.bf16.mxu0 0
      %1312 = vmatmul.mubr.bf16.gmra.mrb[0].mxu0 %v1277
      %v1313 = vpop.f32.mrb[0].mxu0
      %v1314 = vadd.f32 %v1274, %v1313
      %v1315 = vpop.f32.mrb[0].mxu0
      %v1316 = vpop.f32.mrb[0].mxu0
      %v1317 = vpop.f32.mrb[0].mxu0
      %1318 = vdwg.mxu0
      %v1319 = vmul.f32 %v1314, 0.5
      %v1320 = vmul.f32 %v1314, 0.70710677
      %v1321 = vand.u32 2147483647, %v1320
      %v1322 = vmul.f32 %v1321, 0.3275911
      %v1323 = vadd.f32 %v1322, 1.0
      %v1324 = vrcp.pop %v1323
      %v1325 = vmul.f32 1.0, %v1324
      %v1326 = vmul.f32 %v1325, 1.0614054
      %v1327 = vadd.f32 %v1326, -1.4531521
      %v1328 = vmul.f32 %v1327, %v1325
      %v1329 = vadd.f32 %v1328, 1.4214138
      %v1330 = vmul.f32 %v1329, %v1325
      %v1331 = vadd.f32 %v1330, -0.28449672
      %v1332 = vmul.f32 %v1331, %v1325
      %v1333 = vadd.f32 %v1332, 0.2548296
      %v1334 = vmul.f32 %v1333, %v1325
      %v1335 = vsub.f32 0.0, %v1321
      %v1336 = vmul.f32 %v1335, %v1321
      %v1337 = vmul.f32 %v1336, 1.442695
      %v1338 = vpow.pop %v1337
      %v1339 = vmul.f32 %v1334, %v1338
      %v1340 = vsub.f32 1.0, %v1339
      %vm1341 = vcmp.lt.f32.partialorder %v1320, 0.0
      %v1342 = vsub.f32 0.0, %v1340
      %v1343 = vsel %vm1341, %v1342, %v1340
      %v1344 = vadd.f32 %v1343, 1.0
      %v1345 = vmul.f32 %v1319, %v1344
      %v1346 = vld [vmem:[%s15] sm:$0xff]
      %v1347 = vld [vmem:[%s15 + $0x8] sm:$0xff]
      %v1348 = vld [vmem:[%s15 + $0x10] sm:$0xff]
      %v1349 = vld [vmem:[%s15 + $0x18] sm:$0xff]
      %v1350 = vld [vmem:[%s15 + $0x20] sm:$0xff]
      %v1351 = vld [vmem:[%s15 + $0x28] sm:$0xff]
      %v1352 = vld [vmem:[%s15 + $0x30] sm:$0xff]
      %v1353 = vld [vmem:[%s15 + $0x38] sm:$0xff]
      %v1354 = vld [vmem:[%s15 + $0x40] sm:$0xff]
      %v1355 = vld [vmem:[%s15 + $0x48] sm:$0xff]
      %v1356 = vld [vmem:[%s15 + $0x50] sm:$0xff]
      %v1357 = vld [vmem:[%s15 + $0x58] sm:$0xff]
      %v1358 = vld [vmem:[%s15 + $0x60] sm:$0xff]
      %v1359 = vld [vmem:[%s15 + $0x68] sm:$0xff]
      %v1360 = vld [vmem:[%s15 + $0x70] sm:$0xff]
      %v1361 = vld [vmem:[%s15 + $0x78] sm:$0xff]
      %v1362 = vpack.c.bf16 %v1345, %v1345
      %v1363 = vpack.c.bf16 %v1347, %v1346
      %v1364 = vpack.c.bf16 %v1349, %v1348
      %v1365 = vpack.c.bf16 %v1351, %v1350
      %v1366 = vpack.c.bf16 %v1353, %v1352
      %v1367 = vpack.c.bf16 %v1355, %v1354
      %v1368 = vpack.c.bf16 %v1357, %v1356
      %v1369 = vpack.c.bf16 %v1359, %v1358
      %v1370 = vpack.c.bf16 %v1361, %v1360
      %v1371 = vld [vmem:[%s16] sm:$0x1]
      %v1373 = vlaneseq
      %v1374 = vshrl.u32 %v1373, 7
      %v1375 = vsub.s32 0, %v1374
      %v1376 = vrot.slane %v1371, %v1375
      %1378 = vmatprep.subr.bf16.mxu0 0
      %1379 = vmatpush1.bf16.msra.mxu0 %v1363
      %1380 = vmatprep.subr.bf16.mxu0 0
      %1381 = vmatpush1.bf16.msra.mxu0 %v1364
      %1382 = vmatprep.subr.bf16.mxu0 0
      %1383 = vmatpush1.bf16.msra.mxu0 %v1365
      %1384 = vmatprep.subr.bf16.mxu0 0
      %1385 = vmatpush1.bf16.msra.mxu0 %v1366
      %1386 = vmatprep.subr.bf16.mxu0 0
      %1387 = vmatpush1.bf16.msra.mxu0 %v1367
      %1388 = vmatprep.subr.bf16.mxu0 0
      %1389 = vmatpush1.bf16.msra.mxu0 %v1368
      %1390 = vmatprep.subr.bf16.mxu0 0
      %1391 = vmatpush1.bf16.msra.mxu0 %v1369
      %1392 = vmatprep.subr.bf16.mxu0 0
      %1393 = vmatpush1.bf16.msra.mxu0 %v1370
      %1394 = vmatprep.subr.bf16.mxu0 0
      %1395 = vmatpush1.bf16.msra.mxu0 0
      %1396 = vmatprep.subr.bf16.mxu0 0
      %1397 = vmatpush1.bf16.msra.mxu0 0
      %1398 = vmatprep.subr.bf16.mxu0 0
      %1399 = vmatpush1.bf16.msra.mxu0 0
      %1400 = vmatprep.subr.bf16.mxu0 0
      %1401 = vmatpush1.bf16.msra.mxu0 0
      %1402 = vmatprep.subr.bf16.mxu0 0
      %1403 = vmatpush1.bf16.msra.mxu0 0
      %1404 = vmatprep.subr.bf16.mxu0 0
      %1405 = vmatpush1.bf16.msra.mxu0 0
      %1406 = vmatprep.subr.bf16.mxu0 0
      %1407 = vmatpush1.bf16.msra.mxu0 0
      %1408 = vmatprep.subr.bf16.mxu0 0
      %1409 = vmatpush1.bf16.msra.mxu0 0
      %1410 = vmatprep.mubr.bf16.mxu0 0
      %1411 = vmatmul.mubr.bf16.gmra.mrb[0].mxu0 %v1362
      %v1412 = vpop.f32.mrb[0].mxu0
      %v1413 = vadd.f32 %v1376, %v1412
      %v1414 = vpop.f32.mrb[0].mxu0
      %v1415 = vpop.f32.mrb[0].mxu0
      %v1416 = vpop.f32.mrb[0].mxu0
      %1417 = vdwg.mxu0
      %v1418 = vadd.f32 %v1232, %v1413
      %1419 = vst.msk [vmem:[%s543] sm:$0x1f] %vm548, %v1418
      %p1420 = scmp.lt.s32.totalorder %s28, 1
      %s1421 = scalar_select %p1420, %s28, 1
      %s1422 = smul.addr %s1421, 8
      %s1423 = scalar_lea.vmem %s17, %s1422
      // Predicated region
      $region89: #{_lambda_.5} parent=87 // pred_check
        %p1424 = pneg %p408
      $region90: #{_lambda_.5} parent=87 // pred_check_branch
        %1426 = sbr.rel (%p1424) target = $region92
      $region91: #{_lambda_.5} parent=87 // pred_region
        _
      $region92: #{_lambda_.5} parent=87 // pred_fallthru
        _
    $region88: #{_lambda_.5} parent=5 // pred_fallthru
      _
    %p1427 = scmp.le.s32.totalorder 2, %s23
    // Predicated region
    $region93: #{_lambda_.5} parent=5 // pred_check
      %p1428 = pneg %p1427
    $region94: #{_lambda_.5} parent=5 // pred_check_branch
      %1430 = sbr.rel (%p1428) target = $region96
    $region95: #{_lambda_.5} parent=5 // pred_region
      %s1431 = ssub.s32 %s23, 2
      // Predicated region
      $region97: #{_lambda_.5} parent=95 // pred_check
        %p1432 = pneg %p414
      $region98: #{_lambda_.5} parent=95 // pred_check_branch
        %1434 = sbr.rel (%p1432) target = $region100
      $region99: #{_lambda_.5} parent=95 // pred_region
        %p1435 = scmp.lt.s32.totalorder %s29, 1
        %s1436 = scalar_select %p1435, %s29, 1
        %s1437 = smul.addr %s1436, 8
        %s1438 = scalar_lea.vmem %s17, %s1437
      $region100: #{_lambda_.5} parent=95 // pred_fallthru
        _
    $region96: #{_lambda_.5} parent=5 // pred_fallthru
      _
  $region6: #{_lambda_.5} parent=0 // loop_footer
    %s27 = sadd.s32 1, %s23
  $region7: #{_lambda_.5} parent=0 // loop_footer_branch
    %22 = sbr.rel target = $region3
  $region8: #{_lambda_.5} parent=0 // loop_exit
    _

</llo_original>
